<compile_context>
chip_gen: v5e
topology: v5e:2x2
jax: 0.10.0
libtpu: 0.0.40
codegen_flags: <defaults>
</compile_context>

<pallas_src>
import numpy as np
import jax
import jax.numpy as jnp
from jax.experimental import pallas as pl
from jax.experimental.pallas import tpu as pltpu

LATENT_DIM = 64        # small, consistent with Linear(latent_dim, xrd_dim)
XRD_DIM = 128          # lane-aligned XRD length
BATCH = 2
BN_EPS = 1e-5

# Channel plan of the module: conv0 1->64, six halvings 64->...->1, final conv 1->1.
CONV_CHANNELS = [(1, 64), (64, 32), (32, 16), (16, 8), (8, 4), (4, 2), (2, 1), (1, 1)]
N_CONV = len(CONV_CHANNELS)   # 8 convs
N_BN = N_CONV - 1             # 7 BN+ReLU blocks (final conv has neither)

# Layers with >= 4 output channels run on the MXU; the tiny tail runs on the VPU.
MXU_IDX = [i for i, (_, co) in enumerate(CONV_CHANNELS) if co >= 4]   # 0..4
VPU_IDX = [i for i in range(N_CONV) if i not in MXU_IDX]              # 5, 6, 7


def _round_up(n, m):
    return ((n + m - 1) // m) * m


def _round8(n):
    return _round_up(n, 8)


def _pick_batch_tile(b, xrd, batch_tile=None, lane_cap=16384):
    """Pick the per-step batch tile.

    Rules: tb divides b; tb is a multiple of 8 unless it equals b (so the
    (tb, latent) x-block always satisfies the (8,128) BlockSpec rule); the lane
    extent tb*xrd stays under lane_cap; and when possible an *even* number of
    grid steps is preferred so v7x's two TensorCores both receive work.
    """
    cap = max(1, min(b, lane_cap // max(xrd, 1)))
    if batch_tile is not None:
        cap = max(1, min(cap, int(batch_tile)))
    valid = [t for t in range(1, b + 1) if b % t == 0 and (t == b or t % 8 == 0)]
    fitting = [t for t in valid if t <= cap]
    even = [t for t in fitting if (b // t) >= 2 and (b // t) % 2 == 0]
    if even:
        return max(even)
    if fitting:
        return max(fitting)
    return b                      # fall back to a single full-batch step


def _make_kernel(tb, latent, xrd, c0, l0_row, mxu_layers, vpu_layers,
                 bias_row, proj_row, shift_col):
    """Build the kernel closure.

    mxu_layers: list of (cin, cout_pad, base_row) -- rows into the wpack slab
                (the three tap blocks sit at base, base+cout_pad, base+2*cout_pad).
    vpu_layers: list of (cin, cout, w_off, s_off|None) -- offsets into SMEM vector.
    """
    L = xrd
    BL = tb * L

    def kernel(x_ref, wpack_ref, small_ref, o_ref, flat_ref):
        f32 = jnp.float32

        # Hoisted per-sample boundary masks ('same' padding seams), built once.
        lane = jax.lax.broadcasted_iota(jnp.int32, (1, BL), 1)
        pos = (lane & (L - 1)) if (L & (L - 1)) == 0 else (lane % L)
        mask_l = jnp.where(pos > 0, 1.0, 0.0).astype(f32)        # zero at l == 0
        mask_r = jnp.where(pos < L - 1, 1.0, 0.0).astype(f32)    # zero at l == L-1

        def shift_lr(a):
            # value at l-1 / l+1 of every lane, zeroed outside its own sample.
            return (pltpu.roll(a, 1, 1) * mask_l,
                    pltpu.roll(a, BL - 1, 1) * mask_r)

        # ---- nn.Linear(latent, xrd): one MXU matmul over the whole batch tile ----
        wproj = wpack_ref[proj_row:proj_row + latent, 0:L]       # (latent, L)
        bproj = wpack_ref[bias_row:bias_row + 1, 0:L]            # (1, L)
        y = jnp.dot(x_ref[...], wproj, preferred_element_type=f32) + bproj   # (tb, L)

        # Lay samples side by side along lanes: (tb, L) -> (1, tb*L) via a small
        # VMEM scratch row (per-row lane-window stores -- cheap, always lowers).
        if tb == 1:
            h = y
        else:
            for t in range(tb):
                flat_ref[0:1, t * L:(t + 1) * L] = y[t:t + 1, :]
            h = flat_ref[...]

        # ---- layer 0 (1 -> 64): fused-tap matmul, taps built from the 1-row input ----
        xl, xr = shift_lr(h)
        x3 = jnp.concatenate([xl, h, xr], axis=0)                # (3, BL)
        wf0 = wpack_ref[l0_row:l0_row + c0, 0:3]                 # (64, 3)
        sh0 = wpack_ref[l0_row:l0_row + c0, shift_col:shift_col + 1]
        h = jnp.maximum(jnp.dot(wf0, x3, preferred_element_type=f32) + sh0, 0.0)

        # ---- MXU layers: three per-tap matmuls; roll + seam-mask the outputs ----
        for cin, cp, base in mxu_layers:
            wl = wpack_ref[base:base + cp, 0:cin]
            wc = wpack_ref[base + cp:base + 2 * cp, 0:cin]
            wr = wpack_ref[base + 2 * cp:base + 3 * cp, 0:cin]
            yl = jnp.dot(wl, h, preferred_element_type=f32)      # (cp, BL)
            yc = jnp.dot(wc, h, preferred_element_type=f32)
            yr = jnp.dot(wr, h, preferred_element_type=f32)
            acc = (pltpu.roll(yl, 1, 1) * mask_l + yc
                   + pltpu.roll(yr, BL - 1, 1) * mask_r)
            sh = wpack_ref[base:base + cp, shift_col:shift_col + 1]
            h = jnp.maximum(acc + sh, 0.0)                       # (cp, BL)

        # ---- VPU tail (<= 4 channels): scalar MACs from SMEM; roll per-tap sums ----
        for cin, cout, w_off, s_off in vpu_layers:
            rows = []
            for o in range(cout):
                al = ac = ar = None
                for c in range(cin):
                    k = w_off + (o * cin + c) * 3
                    r = h[c:c + 1, :]
                    tl = small_ref[k] * r
                    tc = small_ref[k + 1] * r
                    tr = small_ref[k + 2] * r
                    al = tl if al is None else al + tl
                    ac = tc if ac is None else ac + tc
                    ar = tr if ar is None else ar + tr
                yo = (pltpu.roll(al, 1, 1) * mask_l + ac
                      + pltpu.roll(ar, BL - 1, 1) * mask_r)
                if s_off is not None:                            # folded BN shift + ReLU
                    yo = jnp.maximum(yo + small_ref[s_off + o], 0.0)
                rows.append(yo)
            h = rows[0] if cout == 1 else jnp.concatenate(rows, axis=0)

        o_ref[0] = h                                             # (1, BL) lane-dense store

    return kernel


def xrd_conv_regressor(x, params, *, batch_tile=None):
    b, latent = x.shape
    xrd = params["w_proj"].shape[0]

    tb = _pick_batch_tile(b, xrd, batch_tile)
    nb = b // tb
    bl = tb * xrd

    # ---- fold eval-mode BN scale into conv weights; keep per-channel shifts ----
    scaled_w, shifts = [], []
    for i, (cin, cout) in enumerate(CONV_CHANNELS):
        w = params["conv_w"][i]                                    # (cout, cin, 3)
        if i < N_BN:
            s = params["bn_gamma"][i] / jnp.sqrt(params["bn_var"][i] + BN_EPS)
            shifts.append(params["bn_beta"][i] - params["bn_mean"][i] * s)
            w = w * s[:, None, None]
        else:
            shifts.append(None)
        scaled_w.append(w)

    # ---- row layout of the single VMEM weight slab (all starts 8-aligned) ----
    c0 = CONV_CHANNELS[0][1]                     # 64
    row = 0
    l0_row = row
    row += _round8(c0)
    mxu_pack = []                                # (layer_idx, cin, cout, cp, base)
    for i in MXU_IDX[1:]:
        cin, cout = CONV_CHANNELS[i]
        cp = _round8(cout)                       # 8->4 layer is zero-padded to 8 rows
        mxu_pack.append((i, cin, cout, cp, row))
        row += 3 * cp
    bias_row = row
    row += 8
    proj_row = row
    row += latent
    n_rows = _round8(row)
    n_cols = _round_up(max(xrd, 128), 128)
    shift_col = n_cols - 1                       # free lane in every weight-row block

    wpack = jnp.zeros((n_rows, n_cols), jnp.float32)
    # layer 0: fused taps (64, 3) + shift column
    wpack = wpack.at[l0_row:l0_row + c0, 0:3].set(scaled_w[0][:, 0, :])
    wpack = wpack.at[l0_row:l0_row + c0, shift_col].set(shifts[0])
    # layers 1..4: three tap blocks each, plus shift column on the first block
    for (i, cin, cout, cp, base) in mxu_pack:
        for t in range(3):
            wpack = wpack.at[base + t * cp:base + t * cp + cout, 0:cin].set(
                scaled_w[i][:, :, t])
        wpack = wpack.at[base:base + cout, shift_col].set(shifts[i])
    # projection weights / bias
    wpack = wpack.at[bias_row, 0:xrd].set(params["b_proj"])
    wpack = wpack.at[proj_row:proj_row + latent, 0:xrd].set(jnp.transpose(params["w_proj"]))

    # ---- pack VPU-layer weights (+ shifts) as flat SMEM scalars ----
    small_parts, vpu_layers, off = [], [], 0
    for i in VPU_IDX:
        cin, cout = CONV_CHANNELS[i]
        w_off = off
        small_parts.append(jnp.reshape(scaled_w[i], (-1,)))       # (o, c, tap) C-order
        off += cout * cin * 3
        s_off = None
        if i < N_BN:
            s_off = off
            small_parts.append(shifts[i])
            off += cout
        vpu_layers.append((cin, cout, w_off, s_off))
    small = jnp.concatenate(small_parts).astype(jnp.float32)

    mxu_layers = [(cin, cp, base) for (_, cin, _, cp, base) in mxu_pack]
    kernel = _make_kernel(tb, latent, xrd, c0, l0_row, mxu_layers, vpu_layers,
                          bias_row, proj_row, shift_col)

    out = pl.pallas_call(
        kernel,
        out_shape=jax.ShapeDtypeStruct((nb, 1, bl), jnp.float32),
        grid_spec=pltpu.PrefetchScalarGridSpec(
            num_scalar_prefetch=0,
            grid=(nb,),
            in_specs=[
                pl.BlockSpec((tb, latent), lambda i: (i, 0)),
                pl.BlockSpec((n_rows, n_cols), lambda i: (0, 0)),
                pl.BlockSpec(memory_space=pltpu.MemorySpace.SMEM),
            ],
            out_specs=pl.BlockSpec((1, 1, bl), lambda i: (i, 0, 0)),
            scratch_shapes=[pltpu.VMEM((1, bl), jnp.float32)],
        ),
        compiler_params=pltpu.CompilerParams(dimension_semantics=("parallel",)),
    )(x, wpack, small)

    return out.reshape(b, xrd)


def init_params(key):
    ks = iter(jax.random.split(key, 64))
    params = {}
    params["w_proj"] = (jax.random.normal(next(ks), (XRD_DIM, LATENT_DIM), jnp.float32)
                        / np.sqrt(LATENT_DIM))
    params["b_proj"] = 0.01 * jax.random.normal(next(ks), (XRD_DIM,), jnp.float32)

    conv_w, bn_g, bn_b, bn_m, bn_v = [], [], [], [], []
    for cin, cout in CONV_CHANNELS:
        std = np.sqrt(2.0 / (cin * 3))
        conv_w.append(std * jax.random.normal(next(ks), (cout, cin, 3), jnp.float32))
    for _, cout in CONV_CHANNELS[:N_BN]:
        bn_g.append(1.0 + 0.1 * jax.random.normal(next(ks), (cout,), jnp.float32))
        bn_b.append(0.1 * jax.random.normal(next(ks), (cout,), jnp.float32))
        bn_m.append(0.1 * jax.random.normal(next(ks), (cout,), jnp.float32))
        bn_v.append(1.0 + 0.5 * jax.random.uniform(next(ks), (cout,), jnp.float32))

    params["conv_w"] = conv_w
    params["bn_gamma"] = bn_g
    params["bn_beta"] = bn_b
    params["bn_mean"] = bn_m
    params["bn_var"] = bn_v
    return params


def forward_ref(x, params):
    """Pure-JAX reference mirroring the PyTorch forward (NCL conv semantics)."""
    hp = jax.lax.Precision.HIGHEST
    h = jnp.dot(x, params["w_proj"].T, precision=hp) + params["b_proj"]   # (B, xrd)
    h = h[:, None, :]                                                      # (B, 1, L)
    for i in range(N_CONV):
        w = params["conv_w"][i]                                            # (Cout, Cin, 3)
        hpad = jnp.pad(h, ((0, 0), (0, 0), (1, 1)))
        y = (jnp.einsum("oc,bcl->bol", w[:, :, 0], hpad[:, :, :-2], precision=hp)
             + jnp.einsum("oc,bcl->bol", w[:, :, 1], hpad[:, :, 1:-1], precision=hp)
             + jnp.einsum("oc,bcl->bol", w[:, :, 2], hpad[:, :, 2:], precision=hp))
        if i < N_BN:
            s = params["bn_gamma"][i] / jnp.sqrt(params["bn_var"][i] + BN_EPS)
            t = params["bn_beta"][i] - params["bn_mean"][i] * s
            y = y * s[None, :, None] + t[None, :, None]
            y = jnp.maximum(y, 0.0)
        h = y
    return h[:, 0, :]                                                      # (B, L)


if __name__ == "__main__":
    key = jax.random.PRNGKey(0)
    k_x, k_p = jax.random.split(key)
    x = jax.random.normal(k_x, (BATCH, LATENT_DIM), jnp.float32)
    params = init_params(k_p)

    out = jax.block_until_ready(xrd_conv_regressor(x, params))
    ref = jax.block_until_ready(forward_ref(x, params))

    assert out.shape == (BATCH, XRD_DIM), out.shape
    np.testing.assert_allclose(np.asarray(out), np.asarray(ref), rtol=1e-3, atol=1e-3)

    print("KERNEL_OK")
</pallas_src>

<mosaic_0001>
module attributes {stable_mosaic.version = 11 : i64} {
  func.func @kernel(%arg0: i32, %arg1: memref<2x64xf32, #tpu.memory_space<vmem>>, %arg2: memref<328x128xf32, #tpu.memory_space<vmem>>, %arg3: memref<36xf32, #tpu.memory_space<smem>>, %arg4: memref<1x1x256xf32, #tpu.memory_space<vmem>>, %arg5: memref<1x256xf32, #tpu.memory_space<vmem>>) attributes {dimension_semantics = [#tpu.dimension_semantics<parallel>], iteration_bounds = array<i64: 1>, scalar_prefetch = 0 : i64, scratch_operands = 1 : i64, tpu.core_type = #tpu.core_type<tc>, window_params = [{transform_indices = @transform_0, window_bounds = array<i64: 2, 64>}, {pipeline_mode = #tpu.pipeline_mode<synchronous>, transform_indices = @transform_1, window_bounds = array<i64: 328, 128>}, {transform_indices = @transform_2, window_bounds = array<i64: 36>}, {transform_indices = @transform_3, window_bounds = array<i64: 1, 1, 256>}]} {
    %0 = tpu.iota {dimensions = array<i32: 1>} : vector<1x256xi32>
    %c127_i32 = arith.constant 127 : i32
    %1 = vector.broadcast %c127_i32 : i32 to vector<1x256xi32>
    %2 = arith.andi %0, %1 : vector<1x256xi32>
    %c0_i32 = arith.constant 0 : i32
    %3 = vector.broadcast %c0_i32 : i32 to vector<1x256xi32>
    %4 = arith.cmpi sgt, %2, %3 : vector<1x256xi32>
    %cst = arith.constant 1.000000e+00 : f32
    %cst_0 = arith.constant 0.000000e+00 : f32
    %5 = vector.broadcast %cst : f32 to vector<1x256xf32>
    %6 = vector.broadcast %cst_0 : f32 to vector<1x256xf32>
    %7 = arith.select %4, %5, %6 : vector<1x256xi1>, vector<1x256xf32>
    %c127_i32_1 = arith.constant 127 : i32
    %8 = vector.broadcast %c127_i32_1 : i32 to vector<1x256xi32>
    %9 = arith.cmpi slt, %2, %8 : vector<1x256xi32>
    %cst_2 = arith.constant 1.000000e+00 : f32
    %cst_3 = arith.constant 0.000000e+00 : f32
    %10 = vector.broadcast %cst_2 : f32 to vector<1x256xf32>
    %11 = vector.broadcast %cst_3 : f32 to vector<1x256xf32>
    %12 = arith.select %9, %10, %11 : vector<1x256xi1>, vector<1x256xf32>
    %c264 = arith.constant 264 : index
    %c0 = arith.constant 0 : index
    %13 = vector.load %arg2[%c264, %c0] : memref<328x128xf32, #tpu.memory_space<vmem>>, vector<64x128xf32>
    %c256 = arith.constant 256 : index
    %c0_4 = arith.constant 0 : index
    %14 = vector.load %arg2[%c256, %c0_4] : memref<328x128xf32, #tpu.memory_space<vmem>>, vector<1x128xf32>
    %c0_5 = arith.constant 0 : index
    %c0_6 = arith.constant 0 : index
    %15 = vector.load %arg1[%c0_5, %c0_6] : memref<2x64xf32, #tpu.memory_space<vmem>>, vector<2x64xf32>
    %cst_7 = arith.constant dense<0.000000e+00> : vector<2x128xf32>
    %16 = tpu.matmul %15, %13, %cst_7 {dimension_numbers = #tpu.dot_dimension_numbers<[1], [0], [0], [1], [0, 0, 1, 1], [], []>} : vector<2x64xf32>, vector<64x128xf32>, vector<2x128xf32> -> vector<2x128xf32>
    %17 = vector.broadcast %14 : vector<1x128xf32> to vector<2x128xf32>
    %18 = arith.addf %16, %17 : vector<2x128xf32>
    %19 = vector.extract_strided_slice %18 {offsets = [0, 0], sizes = [1, 128], strides = [1, 1]} : vector<2x128xf32> to vector<1x128xf32>
    %c0_8 = arith.constant 0 : index
    %c0_9 = arith.constant 0 : index
    %20 = vector.load %arg5[%c0_8, %c0_9] : memref<1x256xf32, #tpu.memory_space<vmem>>, vector<1x128xf32>
    tpu.vector_store %arg5[%c0_8, %c0_9], %19 {strides = array<i32>} : memref<1x256xf32, #tpu.memory_space<vmem>>, vector<1x128xf32>,
    %21 = vector.extract_strided_slice %18 {offsets = [1, 0], sizes = [1, 128], strides = [1, 1]} : vector<2x128xf32> to vector<1x128xf32>
    %c0_10 = arith.constant 0 : index
    %c128 = arith.constant 128 : index
    %22 = vector.load %arg5[%c0_10, %c128] : memref<1x256xf32, #tpu.memory_space<vmem>>, vector<1x128xf32>
    tpu.vector_store %arg5[%c0_10, %c128], %21 {strides = array<i32>} : memref<1x256xf32, #tpu.memory_space<vmem>>, vector<1x128xf32>,
    %c0_11 = arith.constant 0 : index
    %c0_12 = arith.constant 0 : index
    %23 = vector.load %arg5[%c0_11, %c0_12] : memref<1x256xf32, #tpu.memory_space<vmem>>, vector<1x256xf32>
    %c1_i32 = arith.constant 1 : i32
    %24 = tpu.dynamic_rotate %23 by %c1_i32 dim 1 : vector<1x256xf32>, i32 -> vector<1x256xf32>
    %25 = arith.mulf %24, %7 : vector<1x256xf32>
    %c255_i32 = arith.constant 255 : i32
    %26 = tpu.dynamic_rotate %23 by %c255_i32 dim 1 : vector<1x256xf32>, i32 -> vector<1x256xf32>
    %27 = arith.mulf %26, %12 : vector<1x256xf32>
    %28 = tpu.concatenate %25, %23, %27 in 0 : vector<1x256xf32>, vector<1x256xf32>, vector<1x256xf32> -> vector<3x256xf32>
    %c0_13 = arith.constant 0 : index
    %c0_14 = arith.constant 0 : index
    %29 = vector.load %arg2[%c0_13, %c0_14] : memref<328x128xf32, #tpu.memory_space<vmem>>, vector<64x3xf32>
    %c0_15 = arith.constant 0 : index
    %c127 = arith.constant 127 : index
    %30 = vector.load %arg2[%c0_15, %c127] : memref<328x128xf32, #tpu.memory_space<vmem>>, vector<64x1xf32>
    %cst_16 = arith.constant dense<0.000000e+00> : vector<64x256xf32>
    %31 = tpu.matmul %29, %28, %cst_16 {dimension_numbers = #tpu.dot_dimension_numbers<[1], [0], [0], [1], [0, 0, 1, 1], [], []>} : vector<64x3xf32>, vector<3x256xf32>, vector<64x256xf32> -> vector<64x256xf32>
    %32 = vector.broadcast %30 : vector<64x1xf32> to vector<64x256xf32>
    %33 = arith.addf %31, %32 : vector<64x256xf32>
    %cst_17 = arith.constant 0.000000e+00 : f32
    %34 = vector.broadcast %cst_17 : f32 to vector<64x256xf32>
    %35 = arith.maximumf %33, %34 : vector<64x256xf32>
    %c64 = arith.constant 64 : index
    %c0_18 = arith.constant 0 : index
    %36 = vector.load %arg2[%c64, %c0_18] : memref<328x128xf32, #tpu.memory_space<vmem>>, vector<32x64xf32>
    %c96 = arith.constant 96 : index
    %c0_19 = arith.constant 0 : index
    %37 = vector.load %arg2[%c96, %c0_19] : memref<328x128xf32, #tpu.memory_space<vmem>>, vector<32x64xf32>
    %c128_20 = arith.constant 128 : index
    %c0_21 = arith.constant 0 : index
    %38 = vector.load %arg2[%c128_20, %c0_21] : memref<328x128xf32, #tpu.memory_space<vmem>>, vector<32x64xf32>
    %cst_22 = arith.constant dense<0.000000e+00> : vector<32x256xf32>
    %39 = tpu.matmul %36, %35, %cst_22 {dimension_numbers = #tpu.dot_dimension_numbers<[1], [0], [0], [1], [0, 0, 1, 1], [], []>} : vector<32x64xf32>, vector<64x256xf32>, vector<32x256xf32> -> vector<32x256xf32>
    %cst_23 = arith.constant dense<0.000000e+00> : vector<32x256xf32>
    %40 = tpu.matmul %37, %35, %cst_23 {dimension_numbers = #tpu.dot_dimension_numbers<[1], [0], [0], [1], [0, 0, 1, 1], [], []>} : vector<32x64xf32>, vector<64x256xf32>, vector<32x256xf32> -> vector<32x256xf32>
    %cst_24 = arith.constant dense<0.000000e+00> : vector<32x256xf32>
    %41 = tpu.matmul %38, %35, %cst_24 {dimension_numbers = #tpu.dot_dimension_numbers<[1], [0], [0], [1], [0, 0, 1, 1], [], []>} : vector<32x64xf32>, vector<64x256xf32>, vector<32x256xf32> -> vector<32x256xf32>
    %c1_i32_25 = arith.constant 1 : i32
    %42 = tpu.dynamic_rotate %39 by %c1_i32_25 dim 1 : vector<32x256xf32>, i32 -> vector<32x256xf32>
    %43 = vector.broadcast %7 : vector<1x256xf32> to vector<32x256xf32>
    %44 = arith.mulf %42, %43 : vector<32x256xf32>
    %45 = arith.addf %44, %40 : vector<32x256xf32>
    %c255_i32_26 = arith.constant 255 : i32
    %46 = tpu.dynamic_rotate %41 by %c255_i32_26 dim 1 : vector<32x256xf32>, i32 -> vector<32x256xf32>
    %47 = vector.broadcast %12 : vector<1x256xf32> to vector<32x256xf32>
    %48 = arith.mulf %46, %47 : vector<32x256xf32>
    %49 = arith.addf %45, %48 : vector<32x256xf32>
    %c64_27 = arith.constant 64 : index
    %c127_28 = arith.constant 127 : index
    %50 = vector.load %arg2[%c64_27, %c127_28] : memref<328x128xf32, #tpu.memory_space<vmem>>, vector<32x1xf32>
    %51 = vector.broadcast %50 : vector<32x1xf32> to vector<32x256xf32>
    %52 = arith.addf %49, %51 : vector<32x256xf32>
    %cst_29 = arith.constant 0.000000e+00 : f32
    %53 = vector.broadcast %cst_29 : f32 to vector<32x256xf32>
    %54 = arith.maximumf %52, %53 : vector<32x256xf32>
    %c160 = arith.constant 160 : index
    %c0_30 = arith.constant 0 : index
    %55 = vector.load %arg2[%c160, %c0_30] : memref<328x128xf32, #tpu.memory_space<vmem>>, vector<16x32xf32>
    %c176 = arith.constant 176 : index
    %c0_31 = arith.constant 0 : index
    %56 = vector.load %arg2[%c176, %c0_31] : memref<328x128xf32, #tpu.memory_space<vmem>>, vector<16x32xf32>
    %c192 = arith.constant 192 : index
    %c0_32 = arith.constant 0 : index
    %57 = vector.load %arg2[%c192, %c0_32] : memref<328x128xf32, #tpu.memory_space<vmem>>, vector<16x32xf32>
    %cst_33 = arith.constant dense<0.000000e+00> : vector<16x256xf32>
    %58 = tpu.matmul %55, %54, %cst_33 {dimension_numbers = #tpu.dot_dimension_numbers<[1], [0], [0], [1], [0, 0, 1, 1], [], []>} : vector<16x32xf32>, vector<32x256xf32>, vector<16x256xf32> -> vector<16x256xf32>
    %cst_34 = arith.constant dense<0.000000e+00> : vector<16x256xf32>
    %59 = tpu.matmul %56, %54, %cst_34 {dimension_numbers = #tpu.dot_dimension_numbers<[1], [0], [0], [1], [0, 0, 1, 1], [], []>} : vector<16x32xf32>, vector<32x256xf32>, vector<16x256xf32> -> vector<16x256xf32>
    %cst_35 = arith.constant dense<0.000000e+00> : vector<16x256xf32>
    %60 = tpu.matmul %57, %54, %cst_35 {dimension_numbers = #tpu.dot_dimension_numbers<[1], [0], [0], [1], [0, 0, 1, 1], [], []>} : vector<16x32xf32>, vector<32x256xf32>, vector<16x256xf32> -> vector<16x256xf32>
    %c1_i32_36 = arith.constant 1 : i32
    %61 = tpu.dynamic_rotate %58 by %c1_i32_36 dim 1 : vector<16x256xf32>, i32 -> vector<16x256xf32>
    %62 = vector.broadcast %7 : vector<1x256xf32> to vector<16x256xf32>
    %63 = arith.mulf %61, %62 : vector<16x256xf32>
    %64 = arith.addf %63, %59 : vector<16x256xf32>
    %c255_i32_37 = arith.constant 255 : i32
    %65 = tpu.dynamic_rotate %60 by %c255_i32_37 dim 1 : vector<16x256xf32>, i32 -> vector<16x256xf32>
    %66 = vector.broadcast %12 : vector<1x256xf32> to vector<16x256xf32>
    %67 = arith.mulf %65, %66 : vector<16x256xf32>
    %68 = arith.addf %64, %67 : vector<16x256xf32>
    %c160_38 = arith.constant 160 : index
    %c127_39 = arith.constant 127 : index
    %69 = vector.load %arg2[%c160_38, %c127_39] : memref<328x128xf32, #tpu.memory_space<vmem>>, vector<16x1xf32>
    %70 = vector.broadcast %69 : vector<16x1xf32> to vector<16x256xf32>
    %71 = arith.addf %68, %70 : vector<16x256xf32>
    %cst_40 = arith.constant 0.000000e+00 : f32
    %72 = vector.broadcast %cst_40 : f32 to vector<16x256xf32>
    %73 = arith.maximumf %71, %72 : vector<16x256xf32>
    %c208 = arith.constant 208 : index
    %c0_41 = arith.constant 0 : index
    %74 = vector.load %arg2[%c208, %c0_41] : memref<328x128xf32, #tpu.memory_space<vmem>>, vector<8x16xf32>
    %c216 = arith.constant 216 : index
    %c0_42 = arith.constant 0 : index
    %75 = vector.load %arg2[%c216, %c0_42] : memref<328x128xf32, #tpu.memory_space<vmem>>, vector<8x16xf32>
    %c224 = arith.constant 224 : index
    %c0_43 = arith.constant 0 : index
    %76 = vector.load %arg2[%c224, %c0_43] : memref<328x128xf32, #tpu.memory_space<vmem>>, vector<8x16xf32>
    %cst_44 = arith.constant dense<0.000000e+00> : vector<8x256xf32>
    %77 = tpu.matmul %74, %73, %cst_44 {dimension_numbers = #tpu.dot_dimension_numbers<[1], [0], [0], [1], [0, 0, 1, 1], [], []>} : vector<8x16xf32>, vector<16x256xf32>, vector<8x256xf32> -> vector<8x256xf32>
    %cst_45 = arith.constant dense<0.000000e+00> : vector<8x256xf32>
    %78 = tpu.matmul %75, %73, %cst_45 {dimension_numbers = #tpu.dot_dimension_numbers<[1], [0], [0], [1], [0, 0, 1, 1], [], []>} : vector<8x16xf32>, vector<16x256xf32>, vector<8x256xf32> -> vector<8x256xf32>
    %cst_46 = arith.constant dense<0.000000e+00> : vector<8x256xf32>
    %79 = tpu.matmul %76, %73, %cst_46 {dimension_numbers = #tpu.dot_dimension_numbers<[1], [0], [0], [1], [0, 0, 1, 1], [], []>} : vector<8x16xf32>, vector<16x256xf32>, vector<8x256xf32> -> vector<8x256xf32>
    %c1_i32_47 = arith.constant 1 : i32
    %80 = tpu.dynamic_rotate %77 by %c1_i32_47 dim 1 : vector<8x256xf32>, i32 -> vector<8x256xf32>
    %81 = vector.broadcast %7 : vector<1x256xf32> to vector<8x256xf32>
    %82 = arith.mulf %80, %81 : vector<8x256xf32>
    %83 = arith.addf %82, %78 : vector<8x256xf32>
    %c255_i32_48 = arith.constant 255 : i32
    %84 = tpu.dynamic_rotate %79 by %c255_i32_48 dim 1 : vector<8x256xf32>, i32 -> vector<8x256xf32>
    %85 = vector.broadcast %12 : vector<1x256xf32> to vector<8x256xf32>
    %86 = arith.mulf %84, %85 : vector<8x256xf32>
    %87 = arith.addf %83, %86 : vector<8x256xf32>
    %c208_49 = arith.constant 208 : index
    %c127_50 = arith.constant 127 : index
    %88 = vector.load %arg2[%c208_49, %c127_50] : memref<328x128xf32, #tpu.memory_space<vmem>>, vector<8x1xf32>
    %89 = vector.broadcast %88 : vector<8x1xf32> to vector<8x256xf32>
    %90 = arith.addf %87, %89 : vector<8x256xf32>
    %cst_51 = arith.constant 0.000000e+00 : f32
    %91 = vector.broadcast %cst_51 : f32 to vector<8x256xf32>
    %92 = arith.maximumf %90, %91 : vector<8x256xf32>
    %c232 = arith.constant 232 : index
    %c0_52 = arith.constant 0 : index
    %93 = vector.load %arg2[%c232, %c0_52] : memref<328x128xf32, #tpu.memory_space<vmem>>, vector<8x8xf32>
    %c240 = arith.constant 240 : index
    %c0_53 = arith.constant 0 : index
    %94 = vector.load %arg2[%c240, %c0_53] : memref<328x128xf32, #tpu.memory_space<vmem>>, vector<8x8xf32>
    %c248 = arith.constant 248 : index
    %c0_54 = arith.constant 0 : index
    %95 = vector.load %arg2[%c248, %c0_54] : memref<328x128xf32, #tpu.memory_space<vmem>>, vector<8x8xf32>
    %cst_55 = arith.constant dense<0.000000e+00> : vector<8x256xf32>
    %96 = tpu.matmul %93, %92, %cst_55 {dimension_numbers = #tpu.dot_dimension_numbers<[1], [0], [0], [1], [0, 0, 1, 1], [], []>} : vector<8x8xf32>, vector<8x256xf32>, vector<8x256xf32> -> vector<8x256xf32>
    %cst_56 = arith.constant dense<0.000000e+00> : vector<8x256xf32>
    %97 = tpu.matmul %94, %92, %cst_56 {dimension_numbers = #tpu.dot_dimension_numbers<[1], [0], [0], [1], [0, 0, 1, 1], [], []>} : vector<8x8xf32>, vector<8x256xf32>, vector<8x256xf32> -> vector<8x256xf32>
    %cst_57 = arith.constant dense<0.000000e+00> : vector<8x256xf32>
    %98 = tpu.matmul %95, %92, %cst_57 {dimension_numbers = #tpu.dot_dimension_numbers<[1], [0], [0], [1], [0, 0, 1, 1], [], []>} : vector<8x8xf32>, vector<8x256xf32>, vector<8x256xf32> -> vector<8x256xf32>
    %c1_i32_58 = arith.constant 1 : i32
    %99 = tpu.dynamic_rotate %96 by %c1_i32_58 dim 1 : vector<8x256xf32>, i32 -> vector<8x256xf32>
    %100 = vector.broadcast %7 : vector<1x256xf32> to vector<8x256xf32>
    %101 = arith.mulf %99, %100 : vector<8x256xf32>
    %102 = arith.addf %101, %97 : vector<8x256xf32>
    %c255_i32_59 = arith.constant 255 : i32
    %103 = tpu.dynamic_rotate %98 by %c255_i32_59 dim 1 : vector<8x256xf32>, i32 -> vector<8x256xf32>
    %104 = vector.broadcast %12 : vector<1x256xf32> to vector<8x256xf32>
    %105 = arith.mulf %103, %104 : vector<8x256xf32>
    %106 = arith.addf %102, %105 : vector<8x256xf32>
    %c232_60 = arith.constant 232 : index
    %c127_61 = arith.constant 127 : index
    %107 = vector.load %arg2[%c232_60, %c127_61] : memref<328x128xf32, #tpu.memory_space<vmem>>, vector<8x1xf32>
    %108 = vector.broadcast %107 : vector<8x1xf32> to vector<8x256xf32>
    %109 = arith.addf %106, %108 : vector<8x256xf32>
    %cst_62 = arith.constant 0.000000e+00 : f32
    %110 = vector.broadcast %cst_62 : f32 to vector<8x256xf32>
    %111 = arith.maximumf %109, %110 : vector<8x256xf32>
    %112 = vector.extract_strided_slice %111 {offsets = [0, 0], sizes = [1, 256], strides = [1, 1]} : vector<8x256xf32> to vector<1x256xf32>
    %c0_63 = arith.constant 0 : index
    %113 = memref.load %arg3[%c0_63] : memref<36xf32, #tpu.memory_space<smem>>
    %114 = vector.broadcast %113 : f32 to vector<1x256xf32>
    %115 = arith.mulf %114, %112 : vector<1x256xf32>
    %c1 = arith.constant 1 : index
    %116 = memref.load %arg3[%c1] : memref<36xf32, #tpu.memory_space<smem>>
    %117 = vector.broadcast %116 : f32 to vector<1x256xf32>
    %118 = arith.mulf %117, %112 : vector<1x256xf32>
    %c2 = arith.constant 2 : index
    %119 = memref.load %arg3[%c2] : memref<36xf32, #tpu.memory_space<smem>>
    %120 = vector.broadcast %119 : f32 to vector<1x256xf32>
    %121 = arith.mulf %120, %112 : vector<1x256xf32>
    %122 = vector.extract_strided_slice %111 {offsets = [1, 0], sizes = [1, 256], strides = [1, 1]} : vector<8x256xf32> to vector<1x256xf32>
    %c3 = arith.constant 3 : index
    %123 = memref.load %arg3[%c3] : memref<36xf32, #tpu.memory_space<smem>>
    %124 = vector.broadcast %123 : f32 to vector<1x256xf32>
    %125 = arith.mulf %124, %122 : vector<1x256xf32>
    %c4 = arith.constant 4 : index
    %126 = memref.load %arg3[%c4] : memref<36xf32, #tpu.memory_space<smem>>
    %127 = vector.broadcast %126 : f32 to vector<1x256xf32>
    %128 = arith.mulf %127, %122 : vector<1x256xf32>
    %c5 = arith.constant 5 : index
    %129 = memref.load %arg3[%c5] : memref<36xf32, #tpu.memory_space<smem>>
    %130 = vector.broadcast %129 : f32 to vector<1x256xf32>
    %131 = arith.mulf %130, %122 : vector<1x256xf32>
    %132 = arith.addf %115, %125 : vector<1x256xf32>
    %133 = arith.addf %118, %128 : vector<1x256xf32>
    %134 = arith.addf %121, %131 : vector<1x256xf32>
    %135 = vector.extract_strided_slice %111 {offsets = [2, 0], sizes = [1, 256], strides = [1, 1]} : vector<8x256xf32> to vector<1x256xf32>
    %c6 = arith.constant 6 : index
    %136 = memref.load %arg3[%c6] : memref<36xf32, #tpu.memory_space<smem>>
    %137 = vector.broadcast %136 : f32 to vector<1x256xf32>
    %138 = arith.mulf %137, %135 : vector<1x256xf32>
    %c7 = arith.constant 7 : index
    %139 = memref.load %arg3[%c7] : memref<36xf32, #tpu.memory_space<smem>>
    %140 = vector.broadcast %139 : f32 to vector<1x256xf32>
    %141 = arith.mulf %140, %135 : vector<1x256xf32>
    %c8 = arith.constant 8 : index
    %142 = memref.load %arg3[%c8] : memref<36xf32, #tpu.memory_space<smem>>
    %143 = vector.broadcast %142 : f32 to vector<1x256xf32>
    %144 = arith.mulf %143, %135 : vector<1x256xf32>
    %145 = arith.addf %132, %138 : vector<1x256xf32>
    %146 = arith.addf %133, %141 : vector<1x256xf32>
    %147 = arith.addf %134, %144 : vector<1x256xf32>
    %148 = vector.extract_strided_slice %111 {offsets = [3, 0], sizes = [1, 256], strides = [1, 1]} : vector<8x256xf32> to vector<1x256xf32>
    %c9 = arith.constant 9 : index
    %149 = memref.load %arg3[%c9] : memref<36xf32, #tpu.memory_space<smem>>
    %150 = vector.broadcast %149 : f32 to vector<1x256xf32>
    %151 = arith.mulf %150, %148 : vector<1x256xf32>
    %c10 = arith.constant 10 : index
    %152 = memref.load %arg3[%c10] : memref<36xf32, #tpu.memory_space<smem>>
    %153 = vector.broadcast %152 : f32 to vector<1x256xf32>
    %154 = arith.mulf %153, %148 : vector<1x256xf32>
    %c11 = arith.constant 11 : index
    %155 = memref.load %arg3[%c11] : memref<36xf32, #tpu.memory_space<smem>>
    %156 = vector.broadcast %155 : f32 to vector<1x256xf32>
    %157 = arith.mulf %156, %148 : vector<1x256xf32>
    %158 = arith.addf %145, %151 : vector<1x256xf32>
    %159 = arith.addf %146, %154 : vector<1x256xf32>
    %160 = arith.addf %147, %157 : vector<1x256xf32>
    %c1_i32_64 = arith.constant 1 : i32
    %161 = tpu.dynamic_rotate %158 by %c1_i32_64 dim 1 : vector<1x256xf32>, i32 -> vector<1x256xf32>
    %162 = arith.mulf %161, %7 : vector<1x256xf32>
    %163 = arith.addf %162, %159 : vector<1x256xf32>
    %c255_i32_65 = arith.constant 255 : i32
    %164 = tpu.dynamic_rotate %160 by %c255_i32_65 dim 1 : vector<1x256xf32>, i32 -> vector<1x256xf32>
    %165 = arith.mulf %164, %12 : vector<1x256xf32>
    %166 = arith.addf %163, %165 : vector<1x256xf32>
    %c24 = arith.constant 24 : index
    %167 = memref.load %arg3[%c24] : memref<36xf32, #tpu.memory_space<smem>>
    %168 = vector.broadcast %167 : f32 to vector<1x256xf32>
    %169 = arith.addf %166, %168 : vector<1x256xf32>
    %cst_66 = arith.constant 0.000000e+00 : f32
    %170 = vector.broadcast %cst_66 : f32 to vector<1x256xf32>
    %171 = arith.maximumf %169, %170 : vector<1x256xf32>
    %172 = vector.extract_strided_slice %111 {offsets = [0, 0], sizes = [1, 256], strides = [1, 1]} : vector<8x256xf32> to vector<1x256xf32>
    %c12 = arith.constant 12 : index
    %173 = memref.load %arg3[%c12] : memref<36xf32, #tpu.memory_space<smem>>
    %174 = vector.broadcast %173 : f32 to vector<1x256xf32>
    %175 = arith.mulf %174, %172 : vector<1x256xf32>
    %c13 = arith.constant 13 : index
    %176 = memref.load %arg3[%c13] : memref<36xf32, #tpu.memory_space<smem>>
    %177 = vector.broadcast %176 : f32 to vector<1x256xf32>
    %178 = arith.mulf %177, %172 : vector<1x256xf32>
    %c14 = arith.constant 14 : index
    %179 = memref.load %arg3[%c14] : memref<36xf32, #tpu.memory_space<smem>>
    %180 = vector.broadcast %179 : f32 to vector<1x256xf32>
    %181 = arith.mulf %180, %172 : vector<1x256xf32>
    %182 = vector.extract_strided_slice %111 {offsets = [1, 0], sizes = [1, 256], strides = [1, 1]} : vector<8x256xf32> to vector<1x256xf32>
    %c15 = arith.constant 15 : index
    %183 = memref.load %arg3[%c15] : memref<36xf32, #tpu.memory_space<smem>>
    %184 = vector.broadcast %183 : f32 to vector<1x256xf32>
    %185 = arith.mulf %184, %182 : vector<1x256xf32>
    %c16 = arith.constant 16 : index
    %186 = memref.load %arg3[%c16] : memref<36xf32, #tpu.memory_space<smem>>
    %187 = vector.broadcast %186 : f32 to vector<1x256xf32>
    %188 = arith.mulf %187, %182 : vector<1x256xf32>
    %c17 = arith.constant 17 : index
    %189 = memref.load %arg3[%c17] : memref<36xf32, #tpu.memory_space<smem>>
    %190 = vector.broadcast %189 : f32 to vector<1x256xf32>
    %191 = arith.mulf %190, %182 : vector<1x256xf32>
    %192 = arith.addf %175, %185 : vector<1x256xf32>
    %193 = arith.addf %178, %188 : vector<1x256xf32>
    %194 = arith.addf %181, %191 : vector<1x256xf32>
    %195 = vector.extract_strided_slice %111 {offsets = [2, 0], sizes = [1, 256], strides = [1, 1]} : vector<8x256xf32> to vector<1x256xf32>
    %c18 = arith.constant 18 : index
    %196 = memref.load %arg3[%c18] : memref<36xf32, #tpu.memory_space<smem>>
    %197 = vector.broadcast %196 : f32 to vector<1x256xf32>
    %198 = arith.mulf %197, %195 : vector<1x256xf32>
    %c19 = arith.constant 19 : index
    %199 = memref.load %arg3[%c19] : memref<36xf32, #tpu.memory_space<smem>>
    %200 = vector.broadcast %199 : f32 to vector<1x256xf32>
    %201 = arith.mulf %200, %195 : vector<1x256xf32>
    %c20 = arith.constant 20 : index
    %202 = memref.load %arg3[%c20] : memref<36xf32, #tpu.memory_space<smem>>
    %203 = vector.broadcast %202 : f32 to vector<1x256xf32>
    %204 = arith.mulf %203, %195 : vector<1x256xf32>
    %205 = arith.addf %192, %198 : vector<1x256xf32>
    %206 = arith.addf %193, %201 : vector<1x256xf32>
    %207 = arith.addf %194, %204 : vector<1x256xf32>
    %208 = vector.extract_strided_slice %111 {offsets = [3, 0], sizes = [1, 256], strides = [1, 1]} : vector<8x256xf32> to vector<1x256xf32>
    %c21 = arith.constant 21 : index
    %209 = memref.load %arg3[%c21] : memref<36xf32, #tpu.memory_space<smem>>
    %210 = vector.broadcast %209 : f32 to vector<1x256xf32>
    %211 = arith.mulf %210, %208 : vector<1x256xf32>
    %c22 = arith.constant 22 : index
    %212 = memref.load %arg3[%c22] : memref<36xf32, #tpu.memory_space<smem>>
    %213 = vector.broadcast %212 : f32 to vector<1x256xf32>
    %214 = arith.mulf %213, %208 : vector<1x256xf32>
    %c23 = arith.constant 23 : index
    %215 = memref.load %arg3[%c23] : memref<36xf32, #tpu.memory_space<smem>>
    %216 = vector.broadcast %215 : f32 to vector<1x256xf32>
    %217 = arith.mulf %216, %208 : vector<1x256xf32>
    %218 = arith.addf %205, %211 : vector<1x256xf32>
    %219 = arith.addf %206, %214 : vector<1x256xf32>
    %220 = arith.addf %207, %217 : vector<1x256xf32>
    %c1_i32_67 = arith.constant 1 : i32
    %221 = tpu.dynamic_rotate %218 by %c1_i32_67 dim 1 : vector<1x256xf32>, i32 -> vector<1x256xf32>
    %222 = arith.mulf %221, %7 : vector<1x256xf32>
    %223 = arith.addf %222, %219 : vector<1x256xf32>
    %c255_i32_68 = arith.constant 255 : i32
    %224 = tpu.dynamic_rotate %220 by %c255_i32_68 dim 1 : vector<1x256xf32>, i32 -> vector<1x256xf32>
    %225 = arith.mulf %224, %12 : vector<1x256xf32>
    %226 = arith.addf %223, %225 : vector<1x256xf32>
    %c25 = arith.constant 25 : index
    %227 = memref.load %arg3[%c25] : memref<36xf32, #tpu.memory_space<smem>>
    %228 = vector.broadcast %227 : f32 to vector<1x256xf32>
    %229 = arith.addf %226, %228 : vector<1x256xf32>
    %cst_69 = arith.constant 0.000000e+00 : f32
    %230 = vector.broadcast %cst_69 : f32 to vector<1x256xf32>
    %231 = arith.maximumf %229, %230 : vector<1x256xf32>
    %232 = tpu.concatenate %171, %231 in 0 : vector<1x256xf32>, vector<1x256xf32> -> vector<2x256xf32>
    %233 = vector.extract_strided_slice %232 {offsets = [0, 0], sizes = [1, 256], strides = [1, 1]} : vector<2x256xf32> to vector<1x256xf32>
    %c26 = arith.constant 26 : index
    %234 = memref.load %arg3[%c26] : memref<36xf32, #tpu.memory_space<smem>>
    %235 = vector.broadcast %234 : f32 to vector<1x256xf32>
    %236 = arith.mulf %235, %233 : vector<1x256xf32>
    %c27 = arith.constant 27 : index
    %237 = memref.load %arg3[%c27] : memref<36xf32, #tpu.memory_space<smem>>
    %238 = vector.broadcast %237 : f32 to vector<1x256xf32>
    %239 = arith.mulf %238, %233 : vector<1x256xf32>
    %c28 = arith.constant 28 : index
    %240 = memref.load %arg3[%c28] : memref<36xf32, #tpu.memory_space<smem>>
    %241 = vector.broadcast %240 : f32 to vector<1x256xf32>
    %242 = arith.mulf %241, %233 : vector<1x256xf32>
    %243 = vector.extract_strided_slice %232 {offsets = [1, 0], sizes = [1, 256], strides = [1, 1]} : vector<2x256xf32> to vector<1x256xf32>
    %c29 = arith.constant 29 : index
    %244 = memref.load %arg3[%c29] : memref<36xf32, #tpu.memory_space<smem>>
    %245 = vector.broadcast %244 : f32 to vector<1x256xf32>
    %246 = arith.mulf %245, %243 : vector<1x256xf32>
    %c30 = arith.constant 30 : index
    %247 = memref.load %arg3[%c30] : memref<36xf32, #tpu.memory_space<smem>>
    %248 = vector.broadcast %247 : f32 to vector<1x256xf32>
    %249 = arith.mulf %248, %243 : vector<1x256xf32>
    %c31 = arith.constant 31 : index
    %250 = memref.load %arg3[%c31] : memref<36xf32, #tpu.memory_space<smem>>
    %251 = vector.broadcast %250 : f32 to vector<1x256xf32>
    %252 = arith.mulf %251, %243 : vector<1x256xf32>
    %253 = arith.addf %236, %246 : vector<1x256xf32>
    %254 = arith.addf %239, %249 : vector<1x256xf32>
    %255 = arith.addf %242, %252 : vector<1x256xf32>
    %c1_i32_70 = arith.constant 1 : i32
    %256 = tpu.dynamic_rotate %253 by %c1_i32_70 dim 1 : vector<1x256xf32>, i32 -> vector<1x256xf32>
    %257 = arith.mulf %256, %7 : vector<1x256xf32>
    %258 = arith.addf %257, %254 : vector<1x256xf32>
    %c255_i32_71 = arith.constant 255 : i32
    %259 = tpu.dynamic_rotate %255 by %c255_i32_71 dim 1 : vector<1x256xf32>, i32 -> vector<1x256xf32>
    %260 = arith.mulf %259, %12 : vector<1x256xf32>
    %261 = arith.addf %258, %260 : vector<1x256xf32>
    %c32 = arith.constant 32 : index
    %262 = memref.load %arg3[%c32] : memref<36xf32, #tpu.memory_space<smem>>
    %263 = vector.broadcast %262 : f32 to vector<1x256xf32>
    %264 = arith.addf %261, %263 : vector<1x256xf32>
    %cst_72 = arith.constant 0.000000e+00 : f32
    %265 = vector.broadcast %cst_72 : f32 to vector<1x256xf32>
    %266 = arith.maximumf %264, %265 : vector<1x256xf32>
    %c33 = arith.constant 33 : index
    %267 = memref.load %arg3[%c33] : memref<36xf32, #tpu.memory_space<smem>>
    %268 = vector.broadcast %267 : f32 to vector<1x256xf32>
    %269 = arith.mulf %268, %266 : vector<1x256xf32>
    %c34 = arith.constant 34 : index
    %270 = memref.load %arg3[%c34] : memref<36xf32, #tpu.memory_space<smem>>
    %271 = vector.broadcast %270 : f32 to vector<1x256xf32>
    %272 = arith.mulf %271, %266 : vector<1x256xf32>
    %c35 = arith.constant 35 : index
    %273 = memref.load %arg3[%c35] : memref<36xf32, #tpu.memory_space<smem>>
    %274 = vector.broadcast %273 : f32 to vector<1x256xf32>
    %275 = arith.mulf %274, %266 : vector<1x256xf32>
    %c1_i32_73 = arith.constant 1 : i32
    %276 = tpu.dynamic_rotate %269 by %c1_i32_73 dim 1 : vector<1x256xf32>, i32 -> vector<1x256xf32>
    %277 = arith.mulf %276, %7 : vector<1x256xf32>
    %278 = arith.addf %277, %272 : vector<1x256xf32>
    %c255_i32_74 = arith.constant 255 : i32
    %279 = tpu.dynamic_rotate %275 by %c255_i32_74 dim 1 : vector<1x256xf32>, i32 -> vector<1x256xf32>
    %280 = arith.mulf %279, %12 : vector<1x256xf32>
    %281 = arith.addf %278, %280 : vector<1x256xf32>
    %c0_75 = arith.constant 0 : index
    %c0_76 = arith.constant 0 : index
    %c0_77 = arith.constant 0 : index
    %282 = vector.load %arg4[%c0_75, %c0_76, %c0_77] : memref<1x1x256xf32, #tpu.memory_space<vmem>>, vector<1x1x256xf32>
    %283 = vector.shape_cast %282 : vector<1x1x256xf32> to vector<1x256xf32>
    %284 = vector.shape_cast %281 : vector<1x256xf32> to vector<1x1x256xf32>
    tpu.vector_store %arg4[%c0_75, %c0_76, %c0_77], %284 {strides = array<i32>} : memref<1x1x256xf32, #tpu.memory_space<vmem>>, vector<1x1x256xf32>,
    return
  }
  func.func @transform_0(%arg0: i32) -> (i32, i32) {
    %c0_i32 = arith.constant 0 : i32
    %c0_i32_0 = arith.constant 0 : i32
    return %arg0, %c0_i32 : i32, i32
  }
  func.func @transform_1(%arg0: i32) -> (i32, i32) {
    %c0_i32 = arith.constant 0 : i32
    %c0_i32_0 = arith.constant 0 : i32
    %c0_i32_1 = arith.constant 0 : i32
    return %c0_i32, %c0_i32_0 : i32, i32
  }
  func.func @transform_2(%arg0: i32) -> i32 {
    %c0_i32 = arith.constant 0 : i32
    %c0_i32_0 = arith.constant 0 : i32
    return %c0_i32 : i32
  }
  func.func @transform_3(%arg0: i32) -> (i32, i32, i32) {
    %c0_i32 = arith.constant 0 : i32
    %c0_i32_0 = arith.constant 0 : i32
    %c0_i32_1 = arith.constant 0 : i32
    return %arg0, %c0_i32, %c0_i32_0 : i32, i32, i32
  }
}

</mosaic_0001>

<llo_original>
// kernel: tpu_custom_call.1
$region0: #{tpu_custom_call.1}
  #allocation0 [shape = 'u32[]', space=smem, size = 0x4, offset = 0x4, fixed_abs, tag = 'smem constant byte address 0x4 - core index']
  #allocation1 [shape = 'u32[72,128]{1,0:T(1,128)}', space=vmem, size = 0x9000, scoped, tag = 'internal scratch']
  #allocation2 [shape = 'f32[1,256]{1,0:T(1,128)}', space=vmem, size = 0x400, scoped, tag = 'scratch operand']
  %s0 = inlined_call_operand.hbm [shape: f32[2,64], index: 0, kind: input, shape index: {}]
  %s1 = inlined_call_operand.hbm [shape: f32[328,128], index: 1, kind: input, shape index: {}]
  %s2 = inlined_call_operand.vmem [shape: f32[36], index: 2, kind: input, shape index: {}]
  %s3 = inlined_call_operand.hbm [shape: f32[1,1,256], index: 3, kind: output, shape index: {}]
  %s4 = sld [smem:[#allocation0]]
  $region34: #{tpu_custom_call.1} parent=0
    _
  %s6 = ssub.s32 1, %s4
  %s7 = scalar_select 0, %s6, %s4
  $region1: #{tpu_custom_call.1} parent=0
    #allocation3 [shape = 'u8[1024]{0}', space=vmem, size = 0x400, scoped, tag = 'input window, operand 0, single buffered']
    #allocation4 [shape = 's32[1]{0}', space=sflag, size = 0x4, scoped, tag = 'scoped memory for tpu_custom_call.1']
    #allocation5 [shape = 's32[1]{0}', space=sflag, size = 0x4, scoped, tag = 'scoped memory for tpu_custom_call.1']
    #allocation6 [shape = 's32[1]{0}', space=sflag, size = 0x4, scoped, tag = 'scoped memory for tpu_custom_call.1']
    #allocation7 [shape = 'u8[167936]{0}', space=vmem, size = 0x29000, scoped, tag = 'input window, operand 1, single buffered']
    #allocation8 [shape = 's32[1]{0}', space=sflag, size = 0x4, scoped, tag = 'scoped memory for tpu_custom_call.1']
    #allocation9 [shape = 'u8[512]{0}', space=smem, size = 0x200, scoped, tag = 'input window, operand 2, single buffered']
    #allocation10 [shape = 'u8[1024]{0}', space=vmem, size = 0x400, scoped, tag = 'output window, operand 0, single buffered']
    %8 = vsyncpa [#allocation4], 0
    %9 = vsyncpa [#allocation8], 0
    %10 = vsyncpa [#allocation6], 0
    %11 = vsyncpa [#allocation5], 0
    // Predicated region
    $region2: #{tpu_custom_call.1} parent=1 // pred_check
      _
    $region3: #{tpu_custom_call.1} parent=1 // pred_check_branch
      %13 = sbr.rel (0) target = $region5
    $region4: #{tpu_custom_call.1} parent=1 // pred_region
      %15 = vsyncadd [#allocation4], 0
      %s17 = sshll.u32 %s0, 4
      %s18 = int_to_ptr.hbm [resolvable:$true] %s17
      %s19 = sshll.u32 [#allocation3], 4
      %s20 = int_to_ptr.vmem [resolvable:$true] %s19
      %22 = dma.hbm_to_vmem [thread:$0]  %s18, 32, %s20, [#allocation4]
    $region5: #{tpu_custom_call.1} parent=1 // pred_fallthru
      _
    // Predicated region
    $region6: #{tpu_custom_call.1} parent=1 // pred_check
      _
    $region7: #{tpu_custom_call.1} parent=1 // pred_check_branch
      %24 = sbr.rel (0) target = $region9
    $region8: #{tpu_custom_call.1} parent=1 // pred_region
      %26 = vsyncadd [#allocation8], 0
      %s27 = sshll.u32 %s1, 4
      %s28 = int_to_ptr.hbm [resolvable:$true] %s27
      %s29 = sshll.u32 [#allocation7], 4
      %s30 = int_to_ptr.vmem [resolvable:$true] %s29
      %35 = dma.hbm_to_vmem [thread:$0]  %s28, 5248, %s30, [#allocation8], 128, 128, 8
    $region9: #{tpu_custom_call.1} parent=1 // pred_fallthru
      _
    // Predicated region
    $region10: #{tpu_custom_call.1} parent=1 // pred_check
      _
    $region11: #{tpu_custom_call.1} parent=1 // pred_check_branch
      %37 = sbr.rel (0) target = $region13
    $region12: #{tpu_custom_call.1} parent=1 // pred_region
      %39 = vsyncadd [#allocation6], 0
      %s41 = sshll.u32 %s2, 4
      %s42 = int_to_ptr.vmem [resolvable:$true] %s41
      %44 = dma.vmem_to_smem %s42, 16, [#allocation9], [#allocation6]
    $region13: #{tpu_custom_call.1} parent=1 // pred_fallthru
      _
    // Predicated region
    $region14: #{tpu_custom_call.1} parent=1 // pred_check
      _
    $region15: #{tpu_custom_call.1} parent=1 // pred_check_branch
      %46 = sbr.rel (0) target = $region17
    $region16: #{tpu_custom_call.1} parent=1 // pred_region
      %48 = dma.done [#allocation4], 32
    $region17: #{tpu_custom_call.1} parent=1 // pred_fallthru
      _
    // Predicated region
    $region18: #{tpu_custom_call.1} parent=1 // pred_check
      _
    $region19: #{tpu_custom_call.1} parent=1 // pred_check_branch
      %50 = sbr.rel (0) target = $region21
    $region20: #{tpu_custom_call.1} parent=1 // pred_region
      %52 = dma.done [#allocation8], 5248
    $region21: #{tpu_custom_call.1} parent=1 // pred_fallthru
      _
    // Predicated region
    $region22: #{tpu_custom_call.1} parent=1 // pred_check
      _
    $region23: #{tpu_custom_call.1} parent=1 // pred_check_branch
      %54 = sbr.rel (0) target = $region25
    $region24: #{tpu_custom_call.1} parent=1 // pred_region
      %56 = dma.done [#allocation6], 16
    $region25: #{tpu_custom_call.1} parent=1 // pred_fallthru
      _
    %57 = sfence
    %v58 = vlaneseq
    %v59 = vand.u32 %v58, 127
    %v60 = vadd.s32 %v59, 128
    %v61 = vand.u32 %v59, 127
    %v62 = vand.u32 %v60, 127
    %vm63 = vcmp.gt.s32.totalorder %v61, 0
    %vm64 = vcmp.gt.s32.totalorder %v62, 0
    %v65 = vsel %vm63, 1.0, 0.0
    %v66 = vsel %vm64, 1.0, 0.0
    %vm67 = vcmp.lt.s32.totalorder %v61, 127
    %vm68 = vcmp.lt.s32.totalorder %v62, 127
    %v69 = vsel %vm67, 1.0, 0.0
    %v70 = vsel %vm68, 1.0, 0.0
    %v71 = vld [vmem:[#allocation7 + $0x108] sm:$0xff]
    %v72 = vld [vmem:[#allocation7 + $0x110] sm:$0xff]
    %v73 = vld [vmem:[#allocation7 + $0x118] sm:$0xff]
    %v74 = vld [vmem:[#allocation7 + $0x120] sm:$0xff]
    %v75 = vld [vmem:[#allocation7 + $0x128] sm:$0xff]
    %v76 = vld [vmem:[#allocation7 + $0x130] sm:$0xff]
    %v77 = vld [vmem:[#allocation7 + $0x138] sm:$0xff]
    %v78 = vld [vmem:[#allocation7 + $0x140] sm:$0xff]
    %v79 = vld [vmem:[#allocation7 + $0x100] sm:$0x1]
    %v80 = vld [vmem:[#allocation3] sm:$0x3]
    %v81 = vperm.slane %v79, 0
    %vm82 = vcmask 523264
    %v84 = vsel %vm82, %v80, 0
    %86 = vmatpush.msra.mxu0 0.0
    %87 = vmatpush.msra.mxu0 0.0
    %88 = vmatpush.msra.mxu0 0.0
    %89 = vmatpush.msra.mxu0 0.0
    %90 = vmatpush.msra.mxu0 0.0
    %91 = vmatpush.msra.mxu0 0.0
    %92 = vmatpush.msra.mxu0 0.0
    %93 = vmatpush.msra.mxu0 0.0
    %94 = vmatpush.msra.mxu0 %v78
    %95 = vmatpush.msra.mxu0 %v77
    %96 = vmatpush.msra.mxu0 %v76
    %97 = vmatpush.msra.mxu0 %v75
    %98 = vmatpush.msra.mxu0 %v74
    %99 = vmatpush.msra.mxu0 %v73
    %100 = vmatpush.msra.mxu0 %v72
    %101 = vmatpush.msra.mxu0 %v71
    %102 = vmatmul.f32.gmra.mxu0 %v84
    %v103 = vpop.f32.mrf.mxu0
    %v104 = vadd.f32 %v81, %v103
    %105 = vdwg.mxu0
    %v106 = vlaneseq
    %vm107 = vcmp.ge.s32.totalorder %v106, 0
    %vm108 = vcmp.lt.s32.totalorder %v106, 128
    %vm109 = vmand %vm107, %vm108
    %110 = vst.msk [vmem:[#allocation2] sm:$0x1] %vm109, %v104
    %112 = vst [vmem:[#allocation1] sm:$0xff] %v104
    %s113 = scalar_lea.vmem [#allocation1], 1
    %v114 = vld [vmem:[%s113] ss:$9 sm:$0xff]
    %116 = vst.msk [vmem:[#allocation2 + $0x1] sm:$0x1] %vm109, %v114
    %v117 = vld [vmem:[#allocation2] sm:$0x3]
    %v119 = vperm.slane %v117, 0
    %v120 = vperm.slane %v117, 1
    %123 = vrot.lane.b32.xlu0 %v119, 1
    %v124 = vpop.permute.xlu0 %123
    %125 = vrot.lane.b32.xlu0 %v120, 1
    %v126 = vpop.permute.xlu0 %125
    %vm127 = vcmp.lt.s32.totalorder %v59, 1
    %v128 = vsel %vm127, %v124, %v126
    %v129 = vsel %vm127, %v126, %v124
    %v130 = vmul.f32 %v129, %v65
    %v131 = vmul.f32 %v128, %v66
    %132 = vrot.lane.b32.xlu0 %v119, 127
    %v133 = vpop.permute.xlu0 %132
    %134 = vrot.lane.b32.xlu0 %v120, 127
    %v135 = vpop.permute.xlu0 %134
    %vm136 = vcmp.lt.s32.totalorder %v59, 127
    %v137 = vsel %vm136, %v133, %v135
    %v138 = vsel %vm136, %v135, %v133
    %v139 = vmul.f32 %v137, %v69
    %v140 = vmul.f32 %v138, %v70
    %v143 = vrot.slane %v139, 6
    %v144 = vrot.slane %v140, 6
    %vm147 = vcmask 1040384
    %v148 = vsel %vm147, %v130, %v119
    %v149 = vsel %vm147, %v131, %v120
    %vm150 = vcmask 1041408
    %v151 = vsel %vm150, %v148, %v143
    %v152 = vsel %vm150, %v149, %v144
    %v153 = vld [vmem:[#allocation7] sm:$0xff]
    %v154 = vld [vmem:[#allocation7 + $0x8] sm:$0xff]
    %v155 = vld [vmem:[#allocation7 + $0x10] sm:$0xff]
    %v156 = vld [vmem:[#allocation7 + $0x18] sm:$0xff]
    %v157 = vld [vmem:[#allocation7 + $0x20] sm:$0xff]
    %v158 = vld [vmem:[#allocation7 + $0x28] sm:$0xff]
    %v159 = vld [vmem:[#allocation7 + $0x30] sm:$0xff]
    %v160 = vld [vmem:[#allocation7 + $0x38] sm:$0xff]
    %162 = vset.pattern.permute.xlu0 127
    %163 = vperm.xlu0 %162, %v153
    %v164 = vpop.permute.xlu0 %163
    %167 = vset.pattern.permute.xlu0 127
    %168 = vperm.xlu0 %167, %v154
    %v169 = vpop.permute.xlu0 %168
    %172 = vset.pattern.permute.xlu0 127
    %173 = vperm.xlu0 %172, %v155
    %v174 = vpop.permute.xlu0 %173
    %177 = vset.pattern.permute.xlu0 127
    %178 = vperm.xlu0 %177, %v156
    %v179 = vpop.permute.xlu0 %178
    %182 = vset.pattern.permute.xlu0 127
    %183 = vperm.xlu0 %182, %v157
    %v184 = vpop.permute.xlu0 %183
    %187 = vset.pattern.permute.xlu0 127
    %188 = vperm.xlu0 %187, %v158
    %v189 = vpop.permute.xlu0 %188
    %192 = vset.pattern.permute.xlu0 127
    %193 = vperm.xlu0 %192, %v159
    %v194 = vpop.permute.xlu0 %193
    %197 = vset.pattern.permute.xlu0 127
    %198 = vperm.xlu0 %197, %v160
    %v199 = vpop.permute.xlu0 %198
    %vm201 = vcmask 23552
    %v202 = vsel %vm201, %v153, 0
    %v204 = vsel %vm201, %v154, 0
    %v206 = vsel %vm201, %v155, 0
    %v208 = vsel %vm201, %v156, 0
    %v210 = vsel %vm201, %v157, 0
    %v212 = vsel %vm201, %v158, 0
    %v214 = vsel %vm201, %v159, 0
    %v216 = vsel %vm201, %v160, 0
    %vm218 = vcmask 1042432
    %v220 = vsel %vm218, %v151, 0
    %v223 = vsel %vm218, %v152, 0
    %225 = vmatpush.msra.mxu0 0.0
    %226 = vmatpush.msra.mxu0 0.0
    %227 = vmatpush.msra.mxu0 0.0
    %228 = vmatpush.msra.mxu0 0.0
    %229 = vmatpush.msra.mxu0 0.0
    %230 = vmatpush.msra.mxu0 0.0
    %231 = vmatpush.msra.mxu0 0.0
    %232 = vmatpush.msra.mxu0 0.0
    %233 = vmatpush.msra.mxu0 0.0
    %234 = vmatpush.msra.mxu0 0.0
    %235 = vmatpush.msra.mxu0 0.0
    %236 = vmatpush.msra.mxu0 0.0
    %237 = vmatpush.msra.mxu0 0.0
    %238 = vmatpush.msra.mxu0 0.0
    %239 = vmatpush.msra.mxu0 0.0
    %240 = vmatpush.msra.mxu0 %v220
    %241 = vmatmul.f32.gmra.mxu0 %v202
    %v242 = vpop.f32.mrf.mxu0
    %v243 = vadd.f32 %v164, %v242
    %244 = vmatmul.f32.gmra.mxu0 %v204
    %v245 = vpop.f32.mrf.mxu0
    %v246 = vadd.f32 %v169, %v245
    %247 = vmatmul.f32.gmra.mxu0 %v206
    %v248 = vpop.f32.mrf.mxu0
    %v249 = vadd.f32 %v174, %v248
    %250 = vmatmul.f32.gmra.mxu0 %v208
    %v251 = vpop.f32.mrf.mxu0
    %v252 = vadd.f32 %v179, %v251
    %253 = vmatmul.f32.gmra.mxu0 %v210
    %v254 = vpop.f32.mrf.mxu0
    %v255 = vadd.f32 %v184, %v254
    %256 = vmatmul.f32.gmra.mxu0 %v212
    %v257 = vpop.f32.mrf.mxu0
    %v258 = vadd.f32 %v189, %v257
    %259 = vmatmul.f32.gmra.mxu0 %v214
    %v260 = vpop.f32.mrf.mxu0
    %v261 = vadd.f32 %v194, %v260
    %262 = vmatmul.f32.gmra.mxu0 %v216
    %v263 = vpop.f32.mrf.mxu0
    %v264 = vadd.f32 %v199, %v263
    %265 = vdwg.mxu0
    %266 = vmatpush.msra.mxu0 0.0
    %267 = vmatpush.msra.mxu0 0.0
    %268 = vmatpush.msra.mxu0 0.0
    %269 = vmatpush.msra.mxu0 0.0
    %270 = vmatpush.msra.mxu0 0.0
    %271 = vmatpush.msra.mxu0 0.0
    %272 = vmatpush.msra.mxu0 0.0
    %273 = vmatpush.msra.mxu0 0.0
    %274 = vmatpush.msra.mxu0 0.0
    %275 = vmatpush.msra.mxu0 0.0
    %276 = vmatpush.msra.mxu0 0.0
    %277 = vmatpush.msra.mxu0 0.0
    %278 = vmatpush.msra.mxu0 0.0
    %279 = vmatpush.msra.mxu0 0.0
    %280 = vmatpush.msra.mxu0 0.0
    %281 = vmatpush.msra.mxu0 %v223
    %282 = vmatmul.f32.gmra.mxu0 %v202
    %v283 = vpop.f32.mrf.mxu0
    %v284 = vadd.f32 %v164, %v283
    %285 = vmatmul.f32.gmra.mxu0 %v204
    %v286 = vpop.f32.mrf.mxu0
    %v287 = vadd.f32 %v169, %v286
    %288 = vmatmul.f32.gmra.mxu0 %v206
    %v289 = vpop.f32.mrf.mxu0
    %v290 = vadd.f32 %v174, %v289
    %291 = vmatmul.f32.gmra.mxu0 %v208
    %v292 = vpop.f32.mrf.mxu0
    %v293 = vadd.f32 %v179, %v292
    %294 = vmatmul.f32.gmra.mxu0 %v210
    %v295 = vpop.f32.mrf.mxu0
    %v296 = vadd.f32 %v184, %v295
    %297 = vmatmul.f32.gmra.mxu0 %v212
    %v298 = vpop.f32.mrf.mxu0
    %v299 = vadd.f32 %v189, %v298
    %300 = vmatmul.f32.gmra.mxu0 %v214
    %v301 = vpop.f32.mrf.mxu0
    %v302 = vadd.f32 %v194, %v301
    %303 = vmatmul.f32.gmra.mxu0 %v216
    %v304 = vpop.f32.mrf.mxu0
    %v305 = vadd.f32 %v199, %v304
    %306 = vdwg.mxu0
    %v307 = vmax.f32 %v243, 0.0
    %v308 = vmax.f32 %v284, 0.0
    %v309 = vmax.f32 %v246, 0.0
    %v310 = vmax.f32 %v287, 0.0
    %v311 = vmax.f32 %v249, 0.0
    %v312 = vmax.f32 %v290, 0.0
    %v313 = vmax.f32 %v252, 0.0
    %v314 = vmax.f32 %v293, 0.0
    %v315 = vmax.f32 %v255, 0.0
    %v316 = vmax.f32 %v296, 0.0
    %v317 = vmax.f32 %v258, 0.0
    %v318 = vmax.f32 %v299, 0.0
    %v319 = vmax.f32 %v261, 0.0
    %v320 = vmax.f32 %v302, 0.0
    %v321 = vmax.f32 %v264, 0.0
    %v322 = vmax.f32 %v305, 0.0
    %v323 = vld [vmem:[#allocation7 + $0x40] sm:$0xff]
    %v324 = vld [vmem:[#allocation7 + $0x48] sm:$0xff]
    %v325 = vld [vmem:[#allocation7 + $0x50] sm:$0xff]
    %v326 = vld [vmem:[#allocation7 + $0x58] sm:$0xff]
    %v327 = vld [vmem:[#allocation7 + $0x60] sm:$0xff]
    %v328 = vld [vmem:[#allocation7 + $0x68] sm:$0xff]
    %v329 = vld [vmem:[#allocation7 + $0x70] sm:$0xff]
    %v330 = vld [vmem:[#allocation7 + $0x78] sm:$0xff]
    %v331 = vld [vmem:[#allocation7 + $0x80] sm:$0xff]
    %v332 = vld [vmem:[#allocation7 + $0x88] sm:$0xff]
    %v333 = vld [vmem:[#allocation7 + $0x90] sm:$0xff]
    %v334 = vld [vmem:[#allocation7 + $0x98] sm:$0xff]
    %v336 = vsel %vm82, %v323, 0
    %v339 = vsel %vm82, %v324, 0
    %v342 = vsel %vm82, %v325, 0
    %v345 = vsel %vm82, %v326, 0
    %347 = vmatpush.msra.mxu0 0.0
    %348 = vmatpush.msra.mxu0 0.0
    %349 = vmatpush.msra.mxu0 0.0
    %350 = vmatpush.msra.mxu0 0.0
    %351 = vmatpush.msra.mxu0 0.0
    %352 = vmatpush.msra.mxu0 0.0
    %353 = vmatpush.msra.mxu0 0.0
    %354 = vmatpush.msra.mxu0 0.0
    %355 = vmatpush.msra.mxu0 %v321
    %356 = vmatpush.msra.mxu0 %v319
    %357 = vmatpush.msra.mxu0 %v317
    %358 = vmatpush.msra.mxu0 %v315
    %359 = vmatpush.msra.mxu0 %v313
    %360 = vmatpush.msra.mxu0 %v311
    %361 = vmatpush.msra.mxu0 %v309
    %362 = vmatpush.msra.mxu0 %v307
    %363 = vmatmul.f32.gmra.mxu0 %v336
    %v364 = vpop.f32.mrf.mxu0
    %v365 = vadd.f32 0.0, %v364
    %366 = vmatmul.f32.gmra.mxu0 %v339
    %v367 = vpop.f32.mrf.mxu0
    %v368 = vadd.f32 0.0, %v367
    %369 = vmatmul.f32.gmra.mxu0 %v342
    %v370 = vpop.f32.mrf.mxu0
    %v371 = vadd.f32 0.0, %v370
    %372 = vmatmul.f32.gmra.mxu0 %v345
    %v373 = vpop.f32.mrf.mxu0
    %v374 = vadd.f32 0.0, %v373
    %375 = vdwg.mxu0
    %376 = vmatpush.msra.mxu0 0.0
    %377 = vmatpush.msra.mxu0 0.0
    %378 = vmatpush.msra.mxu0 0.0
    %379 = vmatpush.msra.mxu0 0.0
    %380 = vmatpush.msra.mxu0 0.0
    %381 = vmatpush.msra.mxu0 0.0
    %382 = vmatpush.msra.mxu0 0.0
    %383 = vmatpush.msra.mxu0 0.0
    %384 = vmatpush.msra.mxu0 %v322
    %385 = vmatpush.msra.mxu0 %v320
    %386 = vmatpush.msra.mxu0 %v318
    %387 = vmatpush.msra.mxu0 %v316
    %388 = vmatpush.msra.mxu0 %v314
    %389 = vmatpush.msra.mxu0 %v312
    %390 = vmatpush.msra.mxu0 %v310
    %391 = vmatpush.msra.mxu0 %v308
    %392 = vmatmul.f32.gmra.mxu0 %v336
    %v393 = vpop.f32.mrf.mxu0
    %v394 = vadd.f32 0.0, %v393
    %395 = vmatmul.f32.gmra.mxu0 %v339
    %v396 = vpop.f32.mrf.mxu0
    %v397 = vadd.f32 0.0, %v396
    %398 = vmatmul.f32.gmra.mxu0 %v342
    %v399 = vpop.f32.mrf.mxu0
    %v400 = vadd.f32 0.0, %v399
    %401 = vmatmul.f32.gmra.mxu0 %v345
    %v402 = vpop.f32.mrf.mxu0
    %v403 = vadd.f32 0.0, %v402
    %404 = vdwg.mxu0
    %v406 = vsel %vm82, %v327, 0
    %v409 = vsel %vm82, %v328, 0
    %v412 = vsel %vm82, %v329, 0
    %v415 = vsel %vm82, %v330, 0
    %417 = vmatpush.msra.mxu0 0.0
    %418 = vmatpush.msra.mxu0 0.0
    %419 = vmatpush.msra.mxu0 0.0
    %420 = vmatpush.msra.mxu0 0.0
    %421 = vmatpush.msra.mxu0 0.0
    %422 = vmatpush.msra.mxu0 0.0
    %423 = vmatpush.msra.mxu0 0.0
    %424 = vmatpush.msra.mxu0 0.0
    %425 = vmatpush.msra.mxu0 %v321
    %426 = vmatpush.msra.mxu0 %v319
    %427 = vmatpush.msra.mxu0 %v317
    %428 = vmatpush.msra.mxu0 %v315
    %429 = vmatpush.msra.mxu0 %v313
    %430 = vmatpush.msra.mxu0 %v311
    %431 = vmatpush.msra.mxu0 %v309
    %432 = vmatpush.msra.mxu0 %v307
    %433 = vmatmul.f32.gmra.mxu0 %v406
    %v434 = vpop.f32.mrf.mxu0
    %v435 = vadd.f32 0.0, %v434
    %436 = vmatmul.f32.gmra.mxu0 %v409
    %v437 = vpop.f32.mrf.mxu0
    %v438 = vadd.f32 0.0, %v437
    %439 = vmatmul.f32.gmra.mxu0 %v412
    %v440 = vpop.f32.mrf.mxu0
    %v441 = vadd.f32 0.0, %v440
    %442 = vmatmul.f32.gmra.mxu0 %v415
    %v443 = vpop.f32.mrf.mxu0
    %v444 = vadd.f32 0.0, %v443
    %445 = vdwg.mxu0
    %446 = vmatpush.msra.mxu0 0.0
    %447 = vmatpush.msra.mxu0 0.0
    %448 = vmatpush.msra.mxu0 0.0
    %449 = vmatpush.msra.mxu0 0.0
    %450 = vmatpush.msra.mxu0 0.0
    %451 = vmatpush.msra.mxu0 0.0
    %452 = vmatpush.msra.mxu0 0.0
    %453 = vmatpush.msra.mxu0 0.0
    %454 = vmatpush.msra.mxu0 %v322
    %455 = vmatpush.msra.mxu0 %v320
    %456 = vmatpush.msra.mxu0 %v318
    %457 = vmatpush.msra.mxu0 %v316
    %458 = vmatpush.msra.mxu0 %v314
    %459 = vmatpush.msra.mxu0 %v312
    %460 = vmatpush.msra.mxu0 %v310
    %461 = vmatpush.msra.mxu0 %v308
    %462 = vmatmul.f32.gmra.mxu0 %v406
    %v463 = vpop.f32.mrf.mxu0
    %v464 = vadd.f32 0.0, %v463
    %465 = vmatmul.f32.gmra.mxu0 %v409
    %v466 = vpop.f32.mrf.mxu0
    %v467 = vadd.f32 0.0, %v466
    %468 = vmatmul.f32.gmra.mxu0 %v412
    %v469 = vpop.f32.mrf.mxu0
    %v470 = vadd.f32 0.0, %v469
    %471 = vmatmul.f32.gmra.mxu0 %v415
    %v472 = vpop.f32.mrf.mxu0
    %v473 = vadd.f32 0.0, %v472
    %474 = vdwg.mxu0
    %v476 = vsel %vm82, %v331, 0
    %v479 = vsel %vm82, %v332, 0
    %v482 = vsel %vm82, %v333, 0
    %v485 = vsel %vm82, %v334, 0
    %487 = vmatpush.msra.mxu0 0.0
    %488 = vmatpush.msra.mxu0 0.0
    %489 = vmatpush.msra.mxu0 0.0
    %490 = vmatpush.msra.mxu0 0.0
    %491 = vmatpush.msra.mxu0 0.0
    %492 = vmatpush.msra.mxu0 0.0
    %493 = vmatpush.msra.mxu0 0.0
    %494 = vmatpush.msra.mxu0 0.0
    %495 = vmatpush.msra.mxu0 %v321
    %496 = vmatpush.msra.mxu0 %v319
    %497 = vmatpush.msra.mxu0 %v317
    %498 = vmatpush.msra.mxu0 %v315
    %499 = vmatpush.msra.mxu0 %v313
    %500 = vmatpush.msra.mxu0 %v311
    %501 = vmatpush.msra.mxu0 %v309
    %502 = vmatpush.msra.mxu0 %v307
    %503 = vmatmul.f32.gmra.mxu0 %v476
    %v504 = vpop.f32.mrf.mxu0
    %v505 = vadd.f32 0.0, %v504
    %506 = vmatmul.f32.gmra.mxu0 %v479
    %v507 = vpop.f32.mrf.mxu0
    %v508 = vadd.f32 0.0, %v507
    %509 = vmatmul.f32.gmra.mxu0 %v482
    %v510 = vpop.f32.mrf.mxu0
    %v511 = vadd.f32 0.0, %v510
    %512 = vmatmul.f32.gmra.mxu0 %v485
    %v513 = vpop.f32.mrf.mxu0
    %v514 = vadd.f32 0.0, %v513
    %515 = vdwg.mxu0
    %516 = vmatpush.msra.mxu0 0.0
    %517 = vmatpush.msra.mxu0 0.0
    %518 = vmatpush.msra.mxu0 0.0
    %519 = vmatpush.msra.mxu0 0.0
    %520 = vmatpush.msra.mxu0 0.0
    %521 = vmatpush.msra.mxu0 0.0
    %522 = vmatpush.msra.mxu0 0.0
    %523 = vmatpush.msra.mxu0 0.0
    %524 = vmatpush.msra.mxu0 %v322
    %525 = vmatpush.msra.mxu0 %v320
    %526 = vmatpush.msra.mxu0 %v318
    %527 = vmatpush.msra.mxu0 %v316
    %528 = vmatpush.msra.mxu0 %v314
    %529 = vmatpush.msra.mxu0 %v312
    %530 = vmatpush.msra.mxu0 %v310
    %531 = vmatpush.msra.mxu0 %v308
    %532 = vmatmul.f32.gmra.mxu0 %v476
    %v533 = vpop.f32.mrf.mxu0
    %v534 = vadd.f32 0.0, %v533
    %535 = vmatmul.f32.gmra.mxu0 %v479
    %v536 = vpop.f32.mrf.mxu0
    %v537 = vadd.f32 0.0, %v536
    %538 = vmatmul.f32.gmra.mxu0 %v482
    %v539 = vpop.f32.mrf.mxu0
    %v540 = vadd.f32 0.0, %v539
    %541 = vmatmul.f32.gmra.mxu0 %v485
    %v542 = vpop.f32.mrf.mxu0
    %v543 = vadd.f32 0.0, %v542
    %544 = vdwg.mxu0
    %545 = vrot.lane.b32.xlu0 %v365, 1
    %v546 = vpop.permute.xlu0 %545
    %547 = vrot.lane.b32.xlu0 %v368, 1
    %v548 = vpop.permute.xlu0 %547
    %549 = vrot.lane.b32.xlu0 %v371, 1
    %v550 = vpop.permute.xlu0 %549
    %551 = vrot.lane.b32.xlu0 %v374, 1
    %v552 = vpop.permute.xlu0 %551
    %553 = vrot.lane.b32.xlu0 %v394, 1
    %v554 = vpop.permute.xlu0 %553
    %555 = vrot.lane.b32.xlu0 %v397, 1
    %v556 = vpop.permute.xlu0 %555
    %557 = vrot.lane.b32.xlu0 %v400, 1
    %v558 = vpop.permute.xlu0 %557
    %559 = vrot.lane.b32.xlu0 %v403, 1
    %v560 = vpop.permute.xlu0 %559
    %v561 = vsel %vm127, %v546, %v554
    %v562 = vsel %vm127, %v548, %v556
    %v563 = vsel %vm127, %v550, %v558
    %v564 = vsel %vm127, %v552, %v560
    %v565 = vsel %vm127, %v554, %v546
    %v566 = vsel %vm127, %v556, %v548
    %v567 = vsel %vm127, %v558, %v550
    %v568 = vsel %vm127, %v560, %v552
    %v569 = vmul.f32 %v565, %v65
    %v570 = vmul.f32 %v561, %v66
    %v571 = vmul.f32 %v566, %v65
    %v572 = vmul.f32 %v562, %v66
    %v573 = vmul.f32 %v567, %v65
    %v574 = vmul.f32 %v563, %v66
    %v575 = vmul.f32 %v568, %v65
    %v576 = vmul.f32 %v564, %v66
    %v577 = vadd.f32 %v569, %v435
    %v578 = vadd.f32 %v570, %v464
    %v579 = vadd.f32 %v571, %v438
    %v580 = vadd.f32 %v572, %v467
    %v581 = vadd.f32 %v573, %v441
    %v582 = vadd.f32 %v574, %v470
    %v583 = vadd.f32 %v575, %v444
    %v584 = vadd.f32 %v576, %v473
    %585 = vrot.lane.b32.xlu0 %v505, 127
    %v586 = vpop.permute.xlu0 %585
    %587 = vrot.lane.b32.xlu0 %v508, 127
    %v588 = vpop.permute.xlu0 %587
    %589 = vrot.lane.b32.xlu0 %v511, 127
    %v590 = vpop.permute.xlu0 %589
    %591 = vrot.lane.b32.xlu0 %v514, 127
    %v592 = vpop.permute.xlu0 %591
    %593 = vrot.lane.b32.xlu0 %v534, 127
    %v594 = vpop.permute.xlu0 %593
    %595 = vrot.lane.b32.xlu0 %v537, 127
    %v596 = vpop.permute.xlu0 %595
    %597 = vrot.lane.b32.xlu0 %v540, 127
    %v598 = vpop.permute.xlu0 %597
    %599 = vrot.lane.b32.xlu0 %v543, 127
    %v600 = vpop.permute.xlu0 %599
    %v601 = vsel %vm136, %v586, %v594
    %v602 = vsel %vm136, %v588, %v596
    %v603 = vsel %vm136, %v590, %v598
    %v604 = vsel %vm136, %v592, %v600
    %v605 = vsel %vm136, %v594, %v586
    %v606 = vsel %vm136, %v596, %v588
    %v607 = vsel %vm136, %v598, %v590
    %v608 = vsel %vm136, %v600, %v592
    %v609 = vmul.f32 %v601, %v69
    %v610 = vmul.f32 %v605, %v70
    %v611 = vmul.f32 %v602, %v69
    %v612 = vmul.f32 %v606, %v70
    %v613 = vmul.f32 %v603, %v69
    %v614 = vmul.f32 %v607, %v70
    %v615 = vmul.f32 %v604, %v69
    %v616 = vmul.f32 %v608, %v70
    %v617 = vadd.f32 %v577, %v609
    %v618 = vadd.f32 %v578, %v610
    %v619 = vadd.f32 %v579, %v611
    %v620 = vadd.f32 %v580, %v612
    %v621 = vadd.f32 %v581, %v613
    %v622 = vadd.f32 %v582, %v614
    %v623 = vadd.f32 %v583, %v615
    %v624 = vadd.f32 %v584, %v616
    %625 = vset.pattern.permute.xlu0 127
    %626 = vperm.xlu0 %625, %v323
    %v627 = vpop.permute.xlu0 %626
    %629 = vset.pattern.permute.xlu0 127
    %630 = vperm.xlu0 %629, %v324
    %v631 = vpop.permute.xlu0 %630
    %633 = vset.pattern.permute.xlu0 127
    %634 = vperm.xlu0 %633, %v325
    %v635 = vpop.permute.xlu0 %634
    %637 = vset.pattern.permute.xlu0 127
    %638 = vperm.xlu0 %637, %v326
    %v639 = vpop.permute.xlu0 %638
    %v641 = vadd.f32 %v617, %v627
    %v642 = vadd.f32 %v618, %v627
    %v643 = vadd.f32 %v619, %v631
    %v644 = vadd.f32 %v620, %v631
    %v645 = vadd.f32 %v621, %v635
    %v646 = vadd.f32 %v622, %v635
    %v647 = vadd.f32 %v623, %v639
    %v648 = vadd.f32 %v624, %v639
    %v649 = vmax.f32 %v641, 0.0
    %v650 = vmax.f32 %v642, 0.0
    %v651 = vmax.f32 %v643, 0.0
    %v652 = vmax.f32 %v644, 0.0
    %v653 = vmax.f32 %v645, 0.0
    %v654 = vmax.f32 %v646, 0.0
    %v655 = vmax.f32 %v647, 0.0
    %v656 = vmax.f32 %v648, 0.0
    %v657 = vld [vmem:[#allocation7 + $0xa0] sm:$0xff]
    %v658 = vld [vmem:[#allocation7 + $0xa8] sm:$0xff]
    %v659 = vld [vmem:[#allocation7 + $0xb0] sm:$0xff]
    %v660 = vld [vmem:[#allocation7 + $0xb8] sm:$0xff]
    %v661 = vld [vmem:[#allocation7 + $0xc0] sm:$0xff]
    %v662 = vld [vmem:[#allocation7 + $0xc8] sm:$0xff]
    %vm663 = vcmask 261120
    %v665 = vsel %vm663, %v657, 0
    %v668 = vsel %vm663, %v658, 0
    %670 = vmatpush.msra.mxu0 0.0
    %671 = vmatpush.msra.mxu0 0.0
    %672 = vmatpush.msra.mxu0 0.0
    %673 = vmatpush.msra.mxu0 0.0
    %674 = vmatpush.msra.mxu0 0.0
    %675 = vmatpush.msra.mxu0 0.0
    %676 = vmatpush.msra.mxu0 0.0
    %677 = vmatpush.msra.mxu0 0.0
    %678 = vmatpush.msra.mxu0 0.0
    %679 = vmatpush.msra.mxu0 0.0
    %680 = vmatpush.msra.mxu0 0.0
    %681 = vmatpush.msra.mxu0 0.0
    %682 = vmatpush.msra.mxu0 %v655
    %683 = vmatpush.msra.mxu0 %v653
    %684 = vmatpush.msra.mxu0 %v651
    %685 = vmatpush.msra.mxu0 %v649
    %686 = vmatmul.f32.gmra.mxu0 %v665
    %v687 = vpop.f32.mrf.mxu0
    %v688 = vadd.f32 0.0, %v687
    %689 = vmatmul.f32.gmra.mxu0 %v668
    %v690 = vpop.f32.mrf.mxu0
    %v691 = vadd.f32 0.0, %v690
    %692 = vdwg.mxu0
    %693 = vmatpush.msra.mxu0 0.0
    %694 = vmatpush.msra.mxu0 0.0
    %695 = vmatpush.msra.mxu0 0.0
    %696 = vmatpush.msra.mxu0 0.0
    %697 = vmatpush.msra.mxu0 0.0
    %698 = vmatpush.msra.mxu0 0.0
    %699 = vmatpush.msra.mxu0 0.0
    %700 = vmatpush.msra.mxu0 0.0
    %701 = vmatpush.msra.mxu0 0.0
    %702 = vmatpush.msra.mxu0 0.0
    %703 = vmatpush.msra.mxu0 0.0
    %704 = vmatpush.msra.mxu0 0.0
    %705 = vmatpush.msra.mxu0 %v656
    %706 = vmatpush.msra.mxu0 %v654
    %707 = vmatpush.msra.mxu0 %v652
    %708 = vmatpush.msra.mxu0 %v650
    %709 = vmatmul.f32.gmra.mxu0 %v665
    %v710 = vpop.f32.mrf.mxu0
    %v711 = vadd.f32 0.0, %v710
    %712 = vmatmul.f32.gmra.mxu0 %v668
    %v713 = vpop.f32.mrf.mxu0
    %v714 = vadd.f32 0.0, %v713
    %715 = vdwg.mxu0
    %v717 = vsel %vm663, %v659, 0
    %v720 = vsel %vm663, %v660, 0
    %722 = vmatpush.msra.mxu0 0.0
    %723 = vmatpush.msra.mxu0 0.0
    %724 = vmatpush.msra.mxu0 0.0
    %725 = vmatpush.msra.mxu0 0.0
    %726 = vmatpush.msra.mxu0 0.0
    %727 = vmatpush.msra.mxu0 0.0
    %728 = vmatpush.msra.mxu0 0.0
    %729 = vmatpush.msra.mxu0 0.0
    %730 = vmatpush.msra.mxu0 0.0
    %731 = vmatpush.msra.mxu0 0.0
    %732 = vmatpush.msra.mxu0 0.0
    %733 = vmatpush.msra.mxu0 0.0
    %734 = vmatpush.msra.mxu0 %v655
    %735 = vmatpush.msra.mxu0 %v653
    %736 = vmatpush.msra.mxu0 %v651
    %737 = vmatpush.msra.mxu0 %v649
    %738 = vmatmul.f32.gmra.mxu0 %v717
    %v739 = vpop.f32.mrf.mxu0
    %v740 = vadd.f32 0.0, %v739
    %741 = vmatmul.f32.gmra.mxu0 %v720
    %v742 = vpop.f32.mrf.mxu0
    %v743 = vadd.f32 0.0, %v742
    %744 = vdwg.mxu0
    %745 = vmatpush.msra.mxu0 0.0
    %746 = vmatpush.msra.mxu0 0.0
    %747 = vmatpush.msra.mxu0 0.0
    %748 = vmatpush.msra.mxu0 0.0
    %749 = vmatpush.msra.mxu0 0.0
    %750 = vmatpush.msra.mxu0 0.0
    %751 = vmatpush.msra.mxu0 0.0
    %752 = vmatpush.msra.mxu0 0.0
    %753 = vmatpush.msra.mxu0 0.0
    %754 = vmatpush.msra.mxu0 0.0
    %755 = vmatpush.msra.mxu0 0.0
    %756 = vmatpush.msra.mxu0 0.0
    %757 = vmatpush.msra.mxu0 %v656
    %758 = vmatpush.msra.mxu0 %v654
    %759 = vmatpush.msra.mxu0 %v652
    %760 = vmatpush.msra.mxu0 %v650
    %761 = vmatmul.f32.gmra.mxu0 %v717
    %v762 = vpop.f32.mrf.mxu0
    %v763 = vadd.f32 0.0, %v762
    %764 = vmatmul.f32.gmra.mxu0 %v720
    %v765 = vpop.f32.mrf.mxu0
    %v766 = vadd.f32 0.0, %v765
    %767 = vdwg.mxu0
    %v769 = vsel %vm663, %v661, 0
    %v772 = vsel %vm663, %v662, 0
    %774 = vmatpush.msra.mxu0 0.0
    %775 = vmatpush.msra.mxu0 0.0
    %776 = vmatpush.msra.mxu0 0.0
    %777 = vmatpush.msra.mxu0 0.0
    %778 = vmatpush.msra.mxu0 0.0
    %779 = vmatpush.msra.mxu0 0.0
    %780 = vmatpush.msra.mxu0 0.0
    %781 = vmatpush.msra.mxu0 0.0
    %782 = vmatpush.msra.mxu0 0.0
    %783 = vmatpush.msra.mxu0 0.0
    %784 = vmatpush.msra.mxu0 0.0
    %785 = vmatpush.msra.mxu0 0.0
    %786 = vmatpush.msra.mxu0 %v655
    %787 = vmatpush.msra.mxu0 %v653
    %788 = vmatpush.msra.mxu0 %v651
    %789 = vmatpush.msra.mxu0 %v649
    %790 = vmatmul.f32.gmra.mxu0 %v769
    %v791 = vpop.f32.mrf.mxu0
    %v792 = vadd.f32 0.0, %v791
    %793 = vmatmul.f32.gmra.mxu0 %v772
    %v794 = vpop.f32.mrf.mxu0
    %v795 = vadd.f32 0.0, %v794
    %796 = vdwg.mxu0
    %797 = vmatpush.msra.mxu0 0.0
    %798 = vmatpush.msra.mxu0 0.0
    %799 = vmatpush.msra.mxu0 0.0
    %800 = vmatpush.msra.mxu0 0.0
    %801 = vmatpush.msra.mxu0 0.0
    %802 = vmatpush.msra.mxu0 0.0
    %803 = vmatpush.msra.mxu0 0.0
    %804 = vmatpush.msra.mxu0 0.0
    %805 = vmatpush.msra.mxu0 0.0
    %806 = vmatpush.msra.mxu0 0.0
    %807 = vmatpush.msra.mxu0 0.0
    %808 = vmatpush.msra.mxu0 0.0
    %809 = vmatpush.msra.mxu0 %v656
    %810 = vmatpush.msra.mxu0 %v654
    %811 = vmatpush.msra.mxu0 %v652
    %812 = vmatpush.msra.mxu0 %v650
    %813 = vmatmul.f32.gmra.mxu0 %v769
    %v814 = vpop.f32.mrf.mxu0
    %v815 = vadd.f32 0.0, %v814
    %816 = vmatmul.f32.gmra.mxu0 %v772
    %v817 = vpop.f32.mrf.mxu0
    %v818 = vadd.f32 0.0, %v817
    %819 = vdwg.mxu0
    %820 = vrot.lane.b32.xlu0 %v688, 1
    %v821 = vpop.permute.xlu0 %820
    %822 = vrot.lane.b32.xlu0 %v691, 1
    %v823 = vpop.permute.xlu0 %822
    %824 = vrot.lane.b32.xlu0 %v711, 1
    %v825 = vpop.permute.xlu0 %824
    %826 = vrot.lane.b32.xlu0 %v714, 1
    %v827 = vpop.permute.xlu0 %826
    %v828 = vsel %vm127, %v821, %v825
    %v829 = vsel %vm127, %v823, %v827
    %v830 = vsel %vm127, %v825, %v821
    %v831 = vsel %vm127, %v827, %v823
    %v832 = vmul.f32 %v830, %v65
    %v833 = vmul.f32 %v828, %v66
    %v834 = vmul.f32 %v831, %v65
    %v835 = vmul.f32 %v829, %v66
    %v836 = vadd.f32 %v832, %v740
    %v837 = vadd.f32 %v833, %v763
    %v838 = vadd.f32 %v834, %v743
    %v839 = vadd.f32 %v835, %v766
    %840 = vrot.lane.b32.xlu0 %v792, 127
    %v841 = vpop.permute.xlu0 %840
    %842 = vrot.lane.b32.xlu0 %v795, 127
    %v843 = vpop.permute.xlu0 %842
    %844 = vrot.lane.b32.xlu0 %v815, 127
    %v845 = vpop.permute.xlu0 %844
    %846 = vrot.lane.b32.xlu0 %v818, 127
    %v847 = vpop.permute.xlu0 %846
    %v848 = vsel %vm136, %v841, %v845
    %v849 = vsel %vm136, %v843, %v847
    %v850 = vsel %vm136, %v845, %v841
    %v851 = vsel %vm136, %v847, %v843
    %v852 = vmul.f32 %v848, %v69
    %v853 = vmul.f32 %v850, %v70
    %v854 = vmul.f32 %v849, %v69
    %v855 = vmul.f32 %v851, %v70
    %v856 = vadd.f32 %v836, %v852
    %v857 = vadd.f32 %v837, %v853
    %v858 = vadd.f32 %v838, %v854
    %v859 = vadd.f32 %v839, %v855
    %860 = vset.pattern.permute.xlu0 127
    %861 = vperm.xlu0 %860, %v657
    %v862 = vpop.permute.xlu0 %861
    %864 = vset.pattern.permute.xlu0 127
    %865 = vperm.xlu0 %864, %v658
    %v866 = vpop.permute.xlu0 %865
    %v868 = vadd.f32 %v856, %v862
    %v869 = vadd.f32 %v857, %v862
    %v870 = vadd.f32 %v858, %v866
    %v871 = vadd.f32 %v859, %v866
    %v872 = vmax.f32 %v868, 0.0
    %v873 = vmax.f32 %v869, 0.0
    %v874 = vmax.f32 %v870, 0.0
    %v875 = vmax.f32 %v871, 0.0
    %v876 = vld [vmem:[#allocation7 + $0xd0] sm:$0xff]
    %v877 = vld [vmem:[#allocation7 + $0xd8] sm:$0xff]
    %v878 = vld [vmem:[#allocation7 + $0xe0] sm:$0xff]
    %vm879 = vcmask 130048
    %v881 = vsel %vm879, %v876, 0
    %883 = vmatpush.msra.mxu0 0.0
    %884 = vmatpush.msra.mxu0 0.0
    %885 = vmatpush.msra.mxu0 0.0
    %886 = vmatpush.msra.mxu0 0.0
    %887 = vmatpush.msra.mxu0 0.0
    %888 = vmatpush.msra.mxu0 0.0
    %889 = vmatpush.msra.mxu0 0.0
    %890 = vmatpush.msra.mxu0 0.0
    %891 = vmatpush.msra.mxu0 0.0
    %892 = vmatpush.msra.mxu0 0.0
    %893 = vmatpush.msra.mxu0 0.0
    %894 = vmatpush.msra.mxu0 0.0
    %895 = vmatpush.msra.mxu0 0.0
    %896 = vmatpush.msra.mxu0 0.0
    %897 = vmatpush.msra.mxu0 %v874
    %898 = vmatpush.msra.mxu0 %v872
    %899 = vmatmul.f32.gmra.mxu0 %v881
    %v900 = vpop.f32.mrf.mxu0
    %v901 = vadd.f32 0.0, %v900
    %902 = vdwg.mxu0
    %903 = vmatpush.msra.mxu0 0.0
    %904 = vmatpush.msra.mxu0 0.0
    %905 = vmatpush.msra.mxu0 0.0
    %906 = vmatpush.msra.mxu0 0.0
    %907 = vmatpush.msra.mxu0 0.0
    %908 = vmatpush.msra.mxu0 0.0
    %909 = vmatpush.msra.mxu0 0.0
    %910 = vmatpush.msra.mxu0 0.0
    %911 = vmatpush.msra.mxu0 0.0
    %912 = vmatpush.msra.mxu0 0.0
    %913 = vmatpush.msra.mxu0 0.0
    %914 = vmatpush.msra.mxu0 0.0
    %915 = vmatpush.msra.mxu0 0.0
    %916 = vmatpush.msra.mxu0 0.0
    %917 = vmatpush.msra.mxu0 %v875
    %918 = vmatpush.msra.mxu0 %v873
    %919 = vmatmul.f32.gmra.mxu0 %v881
    %v920 = vpop.f32.mrf.mxu0
    %v921 = vadd.f32 0.0, %v920
    %922 = vdwg.mxu0
    %v924 = vsel %vm879, %v877, 0
    %926 = vmatpush.msra.mxu0 0.0
    %927 = vmatpush.msra.mxu0 0.0
    %928 = vmatpush.msra.mxu0 0.0
    %929 = vmatpush.msra.mxu0 0.0
    %930 = vmatpush.msra.mxu0 0.0
    %931 = vmatpush.msra.mxu0 0.0
    %932 = vmatpush.msra.mxu0 0.0
    %933 = vmatpush.msra.mxu0 0.0
    %934 = vmatpush.msra.mxu0 0.0
    %935 = vmatpush.msra.mxu0 0.0
    %936 = vmatpush.msra.mxu0 0.0
    %937 = vmatpush.msra.mxu0 0.0
    %938 = vmatpush.msra.mxu0 0.0
    %939 = vmatpush.msra.mxu0 0.0
    %940 = vmatpush.msra.mxu0 %v874
    %941 = vmatpush.msra.mxu0 %v872
    %942 = vmatmul.f32.gmra.mxu0 %v924
    %v943 = vpop.f32.mrf.mxu0
    %v944 = vadd.f32 0.0, %v943
    %945 = vdwg.mxu0
    %946 = vmatpush.msra.mxu0 0.0
    %947 = vmatpush.msra.mxu0 0.0
    %948 = vmatpush.msra.mxu0 0.0
    %949 = vmatpush.msra.mxu0 0.0
    %950 = vmatpush.msra.mxu0 0.0
    %951 = vmatpush.msra.mxu0 0.0
    %952 = vmatpush.msra.mxu0 0.0
    %953 = vmatpush.msra.mxu0 0.0
    %954 = vmatpush.msra.mxu0 0.0
    %955 = vmatpush.msra.mxu0 0.0
    %956 = vmatpush.msra.mxu0 0.0
    %957 = vmatpush.msra.mxu0 0.0
    %958 = vmatpush.msra.mxu0 0.0
    %959 = vmatpush.msra.mxu0 0.0
    %960 = vmatpush.msra.mxu0 %v875
    %961 = vmatpush.msra.mxu0 %v873
    %962 = vmatmul.f32.gmra.mxu0 %v924
    %v963 = vpop.f32.mrf.mxu0
    %v964 = vadd.f32 0.0, %v963
    %965 = vdwg.mxu0
    %v967 = vsel %vm879, %v878, 0
    %969 = vmatpush.msra.mxu0 0.0
    %970 = vmatpush.msra.mxu0 0.0
    %971 = vmatpush.msra.mxu0 0.0
    %972 = vmatpush.msra.mxu0 0.0
    %973 = vmatpush.msra.mxu0 0.0
    %974 = vmatpush.msra.mxu0 0.0
    %975 = vmatpush.msra.mxu0 0.0
    %976 = vmatpush.msra.mxu0 0.0
    %977 = vmatpush.msra.mxu0 0.0
    %978 = vmatpush.msra.mxu0 0.0
    %979 = vmatpush.msra.mxu0 0.0
    %980 = vmatpush.msra.mxu0 0.0
    %981 = vmatpush.msra.mxu0 0.0
    %982 = vmatpush.msra.mxu0 0.0
    %983 = vmatpush.msra.mxu0 %v874
    %984 = vmatpush.msra.mxu0 %v872
    %985 = vmatmul.f32.gmra.mxu0 %v967
    %v986 = vpop.f32.mrf.mxu0
    %v987 = vadd.f32 0.0, %v986
    %988 = vdwg.mxu0
    %989 = vmatpush.msra.mxu0 0.0
    %990 = vmatpush.msra.mxu0 0.0
    %991 = vmatpush.msra.mxu0 0.0
    %992 = vmatpush.msra.mxu0 0.0
    %993 = vmatpush.msra.mxu0 0.0
    %994 = vmatpush.msra.mxu0 0.0
    %995 = vmatpush.msra.mxu0 0.0
    %996 = vmatpush.msra.mxu0 0.0
    %997 = vmatpush.msra.mxu0 0.0
    %998 = vmatpush.msra.mxu0 0.0
    %999 = vmatpush.msra.mxu0 0.0
    %1000 = vmatpush.msra.mxu0 0.0
    %1001 = vmatpush.msra.mxu0 0.0
    %1002 = vmatpush.msra.mxu0 0.0
    %1003 = vmatpush.msra.mxu0 %v875
    %1004 = vmatpush.msra.mxu0 %v873
    %1005 = vmatmul.f32.gmra.mxu0 %v967
    %v1006 = vpop.f32.mrf.mxu0
    %v1007 = vadd.f32 0.0, %v1006
    %1008 = vdwg.mxu0
    %1009 = vrot.lane.b32.xlu0 %v901, 1
    %v1010 = vpop.permute.xlu0 %1009
    %1011 = vrot.lane.b32.xlu0 %v921, 1
    %v1012 = vpop.permute.xlu0 %1011
    %v1013 = vsel %vm127, %v1010, %v1012
    %v1014 = vsel %vm127, %v1012, %v1010
    %v1015 = vmul.f32 %v1014, %v65
    %v1016 = vmul.f32 %v1013, %v66
    %v1017 = vadd.f32 %v1015, %v944
    %v1018 = vadd.f32 %v1016, %v964
    %1019 = vrot.lane.b32.xlu0 %v987, 127
    %v1020 = vpop.permute.xlu0 %1019
    %1021 = vrot.lane.b32.xlu0 %v1007, 127
    %v1022 = vpop.permute.xlu0 %1021
    %v1023 = vsel %vm136, %v1020, %v1022
    %v1024 = vsel %vm136, %v1022, %v1020
    %v1025 = vmul.f32 %v1023, %v69
    %v1026 = vmul.f32 %v1024, %v70
    %v1027 = vadd.f32 %v1017, %v1025
    %v1028 = vadd.f32 %v1018, %v1026
    %1029 = vset.pattern.permute.xlu0 127
    %1030 = vperm.xlu0 %1029, %v876
    %v1031 = vpop.permute.xlu0 %1030
    %v1033 = vadd.f32 %v1027, %v1031
    %v1034 = vadd.f32 %v1028, %v1031
    %v1035 = vmax.f32 %v1033, 0.0
    %v1036 = vmax.f32 %v1034, 0.0
    %v1037 = vld [vmem:[#allocation7 + $0xe8] sm:$0xff]
    %v1038 = vld [vmem:[#allocation7 + $0xf0] sm:$0xff]
    %v1039 = vld [vmem:[#allocation7 + $0xf8] sm:$0xff]
    %vm1040 = vcmask 64512
    %v1042 = vsel %vm1040, %v1037, 0
    %1044 = vmatpush.msra.mxu0 0.0
    %1045 = vmatpush.msra.mxu0 0.0
    %1046 = vmatpush.msra.mxu0 0.0
    %1047 = vmatpush.msra.mxu0 0.0
    %1048 = vmatpush.msra.mxu0 0.0
    %1049 = vmatpush.msra.mxu0 0.0
    %1050 = vmatpush.msra.mxu0 0.0
    %1051 = vmatpush.msra.mxu0 0.0
    %1052 = vmatpush.msra.mxu0 0.0
    %1053 = vmatpush.msra.mxu0 0.0
    %1054 = vmatpush.msra.mxu0 0.0
    %1055 = vmatpush.msra.mxu0 0.0
    %1056 = vmatpush.msra.mxu0 0.0
    %1057 = vmatpush.msra.mxu0 0.0
    %1058 = vmatpush.msra.mxu0 0.0
    %1059 = vmatpush.msra.mxu0 %v1035
    %1060 = vmatmul.f32.gmra.mxu0 %v1042
    %v1061 = vpop.f32.mrf.mxu0
    %v1062 = vadd.f32 0.0, %v1061
    %1063 = vdwg.mxu0
    %1064 = vmatpush.msra.mxu0 0.0
    %1065 = vmatpush.msra.mxu0 0.0
    %1066 = vmatpush.msra.mxu0 0.0
    %1067 = vmatpush.msra.mxu0 0.0
    %1068 = vmatpush.msra.mxu0 0.0
    %1069 = vmatpush.msra.mxu0 0.0
    %1070 = vmatpush.msra.mxu0 0.0
    %1071 = vmatpush.msra.mxu0 0.0
    %1072 = vmatpush.msra.mxu0 0.0
    %1073 = vmatpush.msra.mxu0 0.0
    %1074 = vmatpush.msra.mxu0 0.0
    %1075 = vmatpush.msra.mxu0 0.0
    %1076 = vmatpush.msra.mxu0 0.0
    %1077 = vmatpush.msra.mxu0 0.0
    %1078 = vmatpush.msra.mxu0 0.0
    %1079 = vmatpush.msra.mxu0 %v1036
    %1080 = vmatmul.f32.gmra.mxu0 %v1042
    %v1081 = vpop.f32.mrf.mxu0
    %v1082 = vadd.f32 0.0, %v1081
    %1083 = vdwg.mxu0
    %v1085 = vsel %vm1040, %v1038, 0
    %1087 = vmatpush.msra.mxu0 0.0
    %1088 = vmatpush.msra.mxu0 0.0
    %1089 = vmatpush.msra.mxu0 0.0
    %1090 = vmatpush.msra.mxu0 0.0
    %1091 = vmatpush.msra.mxu0 0.0
    %1092 = vmatpush.msra.mxu0 0.0
    %1093 = vmatpush.msra.mxu0 0.0
    %1094 = vmatpush.msra.mxu0 0.0
    %1095 = vmatpush.msra.mxu0 0.0
    %1096 = vmatpush.msra.mxu0 0.0
    %1097 = vmatpush.msra.mxu0 0.0
    %1098 = vmatpush.msra.mxu0 0.0
    %1099 = vmatpush.msra.mxu0 0.0
    %1100 = vmatpush.msra.mxu0 0.0
    %1101 = vmatpush.msra.mxu0 0.0
    %1102 = vmatpush.msra.mxu0 %v1035
    %1103 = vmatmul.f32.gmra.mxu0 %v1085
    %v1104 = vpop.f32.mrf.mxu0
    %v1105 = vadd.f32 0.0, %v1104
    %1106 = vdwg.mxu0
    %1107 = vmatpush.msra.mxu0 0.0
    %1108 = vmatpush.msra.mxu0 0.0
    %1109 = vmatpush.msra.mxu0 0.0
    %1110 = vmatpush.msra.mxu0 0.0
    %1111 = vmatpush.msra.mxu0 0.0
    %1112 = vmatpush.msra.mxu0 0.0
    %1113 = vmatpush.msra.mxu0 0.0
    %1114 = vmatpush.msra.mxu0 0.0
    %1115 = vmatpush.msra.mxu0 0.0
    %1116 = vmatpush.msra.mxu0 0.0
    %1117 = vmatpush.msra.mxu0 0.0
    %1118 = vmatpush.msra.mxu0 0.0
    %1119 = vmatpush.msra.mxu0 0.0
    %1120 = vmatpush.msra.mxu0 0.0
    %1121 = vmatpush.msra.mxu0 0.0
    %1122 = vmatpush.msra.mxu0 %v1036
    %1123 = vmatmul.f32.gmra.mxu0 %v1085
    %v1124 = vpop.f32.mrf.mxu0
    %v1125 = vadd.f32 0.0, %v1124
    %1126 = vdwg.mxu0
    %v1128 = vsel %vm1040, %v1039, 0
    %1130 = vmatpush.msra.mxu0 0.0
    %1131 = vmatpush.msra.mxu0 0.0
    %1132 = vmatpush.msra.mxu0 0.0
    %1133 = vmatpush.msra.mxu0 0.0
    %1134 = vmatpush.msra.mxu0 0.0
    %1135 = vmatpush.msra.mxu0 0.0
    %1136 = vmatpush.msra.mxu0 0.0
    %1137 = vmatpush.msra.mxu0 0.0
    %1138 = vmatpush.msra.mxu0 0.0
    %1139 = vmatpush.msra.mxu0 0.0
    %1140 = vmatpush.msra.mxu0 0.0
    %1141 = vmatpush.msra.mxu0 0.0
    %1142 = vmatpush.msra.mxu0 0.0
    %1143 = vmatpush.msra.mxu0 0.0
    %1144 = vmatpush.msra.mxu0 0.0
    %1145 = vmatpush.msra.mxu0 %v1035
    %1146 = vmatmul.f32.gmra.mxu0 %v1128
    %v1147 = vpop.f32.mrf.mxu0
    %v1148 = vadd.f32 0.0, %v1147
    %1149 = vdwg.mxu0
    %1150 = vmatpush.msra.mxu0 0.0
    %1151 = vmatpush.msra.mxu0 0.0
    %1152 = vmatpush.msra.mxu0 0.0
    %1153 = vmatpush.msra.mxu0 0.0
    %1154 = vmatpush.msra.mxu0 0.0
    %1155 = vmatpush.msra.mxu0 0.0
    %1156 = vmatpush.msra.mxu0 0.0
    %1157 = vmatpush.msra.mxu0 0.0
    %1158 = vmatpush.msra.mxu0 0.0
    %1159 = vmatpush.msra.mxu0 0.0
    %1160 = vmatpush.msra.mxu0 0.0
    %1161 = vmatpush.msra.mxu0 0.0
    %1162 = vmatpush.msra.mxu0 0.0
    %1163 = vmatpush.msra.mxu0 0.0
    %1164 = vmatpush.msra.mxu0 0.0
    %1165 = vmatpush.msra.mxu0 %v1036
    %1166 = vmatmul.f32.gmra.mxu0 %v1128
    %v1167 = vpop.f32.mrf.mxu0
    %v1168 = vadd.f32 0.0, %v1167
    %1169 = vdwg.mxu0
    %1170 = vrot.lane.b32.xlu0 %v1062, 1
    %v1171 = vpop.permute.xlu0 %1170
    %1172 = vrot.lane.b32.xlu0 %v1082, 1
    %v1173 = vpop.permute.xlu0 %1172
    %v1174 = vsel %vm127, %v1171, %v1173
    %v1175 = vsel %vm127, %v1173, %v1171
    %v1176 = vmul.f32 %v1175, %v65
    %v1177 = vmul.f32 %v1174, %v66
    %v1178 = vadd.f32 %v1176, %v1105
    %v1179 = vadd.f32 %v1177, %v1125
    %1180 = vrot.lane.b32.xlu0 %v1148, 127
    %v1181 = vpop.permute.xlu0 %1180
    %1182 = vrot.lane.b32.xlu0 %v1168, 127
    %v1183 = vpop.permute.xlu0 %1182
    %v1184 = vsel %vm136, %v1181, %v1183
    %v1185 = vsel %vm136, %v1183, %v1181
    %v1186 = vmul.f32 %v1184, %v69
    %v1187 = vmul.f32 %v1185, %v70
    %v1188 = vadd.f32 %v1178, %v1186
    %v1189 = vadd.f32 %v1179, %v1187
    %1190 = vset.pattern.permute.xlu0 127
    %1191 = vperm.xlu0 %1190, %v1037
    %v1192 = vpop.permute.xlu0 %1191
    %v1194 = vadd.f32 %v1188, %v1192
    %v1195 = vadd.f32 %v1189, %v1192
    %v1196 = vmax.f32 %v1194, 0.0
    %v1197 = vmax.f32 %v1195, 0.0
    %s1198 = sld [smem:[#allocation9]]
    %v1199 = vstv %s1198
    %v1200 = vmul.f32 %v1199, %v1196
    %v1201 = vmul.f32 %v1199, %v1197
    %s1202 = sld [smem:[#allocation9 + $0x1]]
    %v1203 = vstv %s1202
    %v1204 = vmul.f32 %v1203, %v1196
    %v1205 = vmul.f32 %v1203, %v1197
    %s1206 = sld [smem:[#allocation9 + $0x2]]
    %v1207 = vstv %s1206
    %v1208 = vmul.f32 %v1207, %v1196
    %v1209 = vmul.f32 %v1207, %v1197
    %s1210 = sld [smem:[#allocation9 + $0x3]]
    %v1211 = vstv %s1210
    %v1212 = vmul.f32 %v1211, %v1196
    %v1213 = vmul.f32 %v1211, %v1197
    %s1214 = sld [smem:[#allocation9 + $0x4]]
    %v1215 = vstv %s1214
    %v1216 = vmul.f32 %v1215, %v1196
    %v1217 = vmul.f32 %v1215, %v1197
    %s1218 = sld [smem:[#allocation9 + $0x5]]
    %v1219 = vstv %s1218
    %v1220 = vmul.f32 %v1219, %v1196
    %v1221 = vmul.f32 %v1219, %v1197
    %v1224 = vrot.slane %v1212, 1
    %v1225 = vrot.slane %v1213, 1
    %v1228 = vadd.f32 %v1200, %v1224
    %v1229 = vadd.f32 %v1201, %v1225
    %v1232 = vrot.slane %v1216, 1
    %v1233 = vrot.slane %v1217, 1
    %v1236 = vadd.f32 %v1204, %v1232
    %v1237 = vadd.f32 %v1205, %v1233
    %v1240 = vrot.slane %v1220, 1
    %v1241 = vrot.slane %v1221, 1
    %v1244 = vadd.f32 %v1208, %v1240
    %v1245 = vadd.f32 %v1209, %v1241
    %s1246 = sld [smem:[#allocation9 + $0x6]]
    %v1247 = vstv %s1246
    %v1248 = vmul.f32 %v1247, %v1196
    %v1249 = vmul.f32 %v1247, %v1197
    %s1250 = sld [smem:[#allocation9 + $0x7]]
    %v1251 = vstv %s1250
    %v1252 = vmul.f32 %v1251, %v1196
    %v1253 = vmul.f32 %v1251, %v1197
    %s1254 = sld [smem:[#allocation9 + $0x8]]
    %v1255 = vstv %s1254
    %v1256 = vmul.f32 %v1255, %v1196
    %v1257 = vmul.f32 %v1255, %v1197
    %v1260 = vrot.slane %v1248, 2
    %v1261 = vrot.slane %v1249, 2
    %v1264 = vadd.f32 %v1228, %v1260
    %v1265 = vadd.f32 %v1229, %v1261
    %v1268 = vrot.slane %v1252, 2
    %v1269 = vrot.slane %v1253, 2
    %v1272 = vadd.f32 %v1236, %v1268
    %v1273 = vadd.f32 %v1237, %v1269
    %v1276 = vrot.slane %v1256, 2
    %v1277 = vrot.slane %v1257, 2
    %v1280 = vadd.f32 %v1244, %v1276
    %v1281 = vadd.f32 %v1245, %v1277
    %s1282 = sld [smem:[#allocation9 + $0x9]]
    %v1283 = vstv %s1282
    %v1284 = vmul.f32 %v1283, %v1196
    %v1285 = vmul.f32 %v1283, %v1197
    %s1286 = sld [smem:[#allocation9 + $0xa]]
    %v1287 = vstv %s1286
    %v1288 = vmul.f32 %v1287, %v1196
    %v1289 = vmul.f32 %v1287, %v1197
    %s1290 = sld [smem:[#allocation9 + $0xb]]
    %v1291 = vstv %s1290
    %v1292 = vmul.f32 %v1291, %v1196
    %v1293 = vmul.f32 %v1291, %v1197
    %v1296 = vrot.slane %v1284, 3
    %v1297 = vrot.slane %v1285, 3
    %v1300 = vadd.f32 %v1264, %v1296
    %v1301 = vadd.f32 %v1265, %v1297
    %v1304 = vrot.slane %v1288, 3
    %v1305 = vrot.slane %v1289, 3
    %v1308 = vadd.f32 %v1272, %v1304
    %v1309 = vadd.f32 %v1273, %v1305
    %v1312 = vrot.slane %v1292, 3
    %v1313 = vrot.slane %v1293, 3
    %v1316 = vadd.f32 %v1280, %v1312
    %v1317 = vadd.f32 %v1281, %v1313
    %1318 = vrot.lane.b32.xlu0 %v1300, 1
    %v1319 = vpop.permute.xlu0 %1318
    %1320 = vrot.lane.b32.xlu0 %v1301, 1
    %v1321 = vpop.permute.xlu0 %1320
    %v1322 = vsel %vm127, %v1319, %v1321
    %v1323 = vsel %vm127, %v1321, %v1319
    %v1324 = vmul.f32 %v1323, %v65
    %v1325 = vmul.f32 %v1322, %v66
    %v1326 = vadd.f32 %v1324, %v1308
    %v1327 = vadd.f32 %v1325, %v1309
    %1328 = vrot.lane.b32.xlu0 %v1316, 127
    %v1329 = vpop.permute.xlu0 %1328
    %1330 = vrot.lane.b32.xlu0 %v1317, 127
    %v1331 = vpop.permute.xlu0 %1330
    %v1332 = vsel %vm136, %v1329, %v1331
    %v1333 = vsel %vm136, %v1331, %v1329
    %v1334 = vmul.f32 %v1332, %v69
    %v1335 = vmul.f32 %v1333, %v70
    %v1336 = vadd.f32 %v1326, %v1334
    %v1337 = vadd.f32 %v1327, %v1335
    %s1338 = sld [smem:[#allocation9 + $0x18]]
    %v1339 = vstv %s1338
    %v1340 = vadd.f32 %v1336, %v1339
    %v1341 = vadd.f32 %v1337, %v1339
    %v1342 = vmax.f32 %v1340, 0.0
    %v1343 = vmax.f32 %v1341, 0.0
    %s1344 = sld [smem:[#allocation9 + $0xc]]
    %v1345 = vstv %s1344
    %v1346 = vmul.f32 %v1345, %v1196
    %v1347 = vmul.f32 %v1345, %v1197
    %s1348 = sld [smem:[#allocation9 + $0xd]]
    %v1349 = vstv %s1348
    %v1350 = vmul.f32 %v1349, %v1196
    %v1351 = vmul.f32 %v1349, %v1197
    %s1352 = sld [smem:[#allocation9 + $0xe]]
    %v1353 = vstv %s1352
    %v1354 = vmul.f32 %v1353, %v1196
    %v1355 = vmul.f32 %v1353, %v1197
    %s1356 = sld [smem:[#allocation9 + $0xf]]
    %v1357 = vstv %s1356
    %v1358 = vmul.f32 %v1357, %v1196
    %v1359 = vmul.f32 %v1357, %v1197
    %s1360 = sld [smem:[#allocation9 + $0x10]]
    %v1361 = vstv %s1360
    %v1362 = vmul.f32 %v1361, %v1196
    %v1363 = vmul.f32 %v1361, %v1197
    %s1364 = sld [smem:[#allocation9 + $0x11]]
    %v1365 = vstv %s1364
    %v1366 = vmul.f32 %v1365, %v1196
    %v1367 = vmul.f32 %v1365, %v1197
    %v1370 = vrot.slane %v1358, 1
    %v1371 = vrot.slane %v1359, 1
    %v1374 = vadd.f32 %v1346, %v1370
    %v1375 = vadd.f32 %v1347, %v1371
    %v1378 = vrot.slane %v1362, 1
    %v1379 = vrot.slane %v1363, 1
    %v1382 = vadd.f32 %v1350, %v1378
    %v1383 = vadd.f32 %v1351, %v1379
    %v1386 = vrot.slane %v1366, 1
    %v1387 = vrot.slane %v1367, 1
    %v1390 = vadd.f32 %v1354, %v1386
    %v1391 = vadd.f32 %v1355, %v1387
    %s1392 = sld [smem:[#allocation9 + $0x12]]
    %v1393 = vstv %s1392
    %v1394 = vmul.f32 %v1393, %v1196
    %v1395 = vmul.f32 %v1393, %v1197
    %s1396 = sld [smem:[#allocation9 + $0x13]]
    %v1397 = vstv %s1396
    %v1398 = vmul.f32 %v1397, %v1196
    %v1399 = vmul.f32 %v1397, %v1197
    %s1400 = sld [smem:[#allocation9 + $0x14]]
    %v1401 = vstv %s1400
    %v1402 = vmul.f32 %v1401, %v1196
    %v1403 = vmul.f32 %v1401, %v1197
    %v1406 = vrot.slane %v1394, 2
    %v1407 = vrot.slane %v1395, 2
    %v1410 = vadd.f32 %v1374, %v1406
    %v1411 = vadd.f32 %v1375, %v1407
    %v1414 = vrot.slane %v1398, 2
    %v1415 = vrot.slane %v1399, 2
    %v1418 = vadd.f32 %v1382, %v1414
    %v1419 = vadd.f32 %v1383, %v1415
    %v1422 = vrot.slane %v1402, 2
    %v1423 = vrot.slane %v1403, 2
    %v1426 = vadd.f32 %v1390, %v1422
    %v1427 = vadd.f32 %v1391, %v1423
    %s1428 = sld [smem:[#allocation9 + $0x15]]
    %v1429 = vstv %s1428
    %v1430 = vmul.f32 %v1429, %v1196
    %v1431 = vmul.f32 %v1429, %v1197
    %s1432 = sld [smem:[#allocation9 + $0x16]]
    %v1433 = vstv %s1432
    %v1434 = vmul.f32 %v1433, %v1196
    %v1435 = vmul.f32 %v1433, %v1197
    %s1436 = sld [smem:[#allocation9 + $0x17]]
    %v1437 = vstv %s1436
    %v1438 = vmul.f32 %v1437, %v1196
    %v1439 = vmul.f32 %v1437, %v1197
    %v1442 = vrot.slane %v1430, 3
    %v1443 = vrot.slane %v1431, 3
    %v1446 = vadd.f32 %v1410, %v1442
    %v1447 = vadd.f32 %v1411, %v1443
    %v1450 = vrot.slane %v1434, 3
    %v1451 = vrot.slane %v1435, 3
    %v1454 = vadd.f32 %v1418, %v1450
    %v1455 = vadd.f32 %v1419, %v1451
    %v1458 = vrot.slane %v1438, 3
    %v1459 = vrot.slane %v1439, 3
    %v1462 = vadd.f32 %v1426, %v1458
    %v1463 = vadd.f32 %v1427, %v1459
    %1464 = vrot.lane.b32.xlu0 %v1446, 1
    %v1465 = vpop.permute.xlu0 %1464
    %1466 = vrot.lane.b32.xlu0 %v1447, 1
    %v1467 = vpop.permute.xlu0 %1466
    %v1468 = vsel %vm127, %v1465, %v1467
    %v1469 = vsel %vm127, %v1467, %v1465
    %v1470 = vmul.f32 %v1469, %v65
    %v1471 = vmul.f32 %v1468, %v66
    %v1472 = vadd.f32 %v1470, %v1454
    %v1473 = vadd.f32 %v1471, %v1455
    %1474 = vrot.lane.b32.xlu0 %v1462, 127
    %v1475 = vpop.permute.xlu0 %1474
    %1476 = vrot.lane.b32.xlu0 %v1463, 127
    %v1477 = vpop.permute.xlu0 %1476
    %v1478 = vsel %vm136, %v1475, %v1477
    %v1479 = vsel %vm136, %v1477, %v1475
    %v1480 = vmul.f32 %v1478, %v69
    %v1481 = vmul.f32 %v1479, %v70
    %v1482 = vadd.f32 %v1472, %v1480
    %v1483 = vadd.f32 %v1473, %v1481
    %s1484 = sld [smem:[#allocation9 + $0x19]]
    %v1485 = vstv %s1484
    %v1486 = vadd.f32 %v1482, %v1485
    %v1487 = vadd.f32 %v1483, %v1485
    %v1488 = vmax.f32 %v1486, 0.0
    %v1489 = vmax.f32 %v1487, 0.0
    %v1492 = vrot.slane %v1488, 7
    %v1493 = vrot.slane %v1489, 7
    %v1496 = vsel %vm147, %v1342, %v1492
    %v1497 = vsel %vm147, %v1343, %v1493
    %s1498 = sld [smem:[#allocation9 + $0x1a]]
    %v1499 = vstv %s1498
    %v1500 = vmul.f32 %v1499, %v1496
    %v1501 = vmul.f32 %v1499, %v1497
    %s1502 = sld [smem:[#allocation9 + $0x1b]]
    %v1503 = vstv %s1502
    %v1504 = vmul.f32 %v1503, %v1496
    %v1505 = vmul.f32 %v1503, %v1497
    %s1506 = sld [smem:[#allocation9 + $0x1c]]
    %v1507 = vstv %s1506
    %v1508 = vmul.f32 %v1507, %v1496
    %v1509 = vmul.f32 %v1507, %v1497
    %s1510 = sld [smem:[#allocation9 + $0x1d]]
    %v1511 = vstv %s1510
    %v1512 = vmul.f32 %v1511, %v1496
    %v1513 = vmul.f32 %v1511, %v1497
    %s1514 = sld [smem:[#allocation9 + $0x1e]]
    %v1515 = vstv %s1514
    %v1516 = vmul.f32 %v1515, %v1496
    %v1517 = vmul.f32 %v1515, %v1497
    %s1518 = sld [smem:[#allocation9 + $0x1f]]
    %v1519 = vstv %s1518
    %v1520 = vmul.f32 %v1519, %v1496
    %v1521 = vmul.f32 %v1519, %v1497
    %v1524 = vrot.slane %v1512, 1
    %v1525 = vrot.slane %v1513, 1
    %v1528 = vadd.f32 %v1500, %v1524
    %v1529 = vadd.f32 %v1501, %v1525
    %v1532 = vrot.slane %v1516, 1
    %v1533 = vrot.slane %v1517, 1
    %v1536 = vadd.f32 %v1504, %v1532
    %v1537 = vadd.f32 %v1505, %v1533
    %v1540 = vrot.slane %v1520, 1
    %v1541 = vrot.slane %v1521, 1
    %v1544 = vadd.f32 %v1508, %v1540
    %v1545 = vadd.f32 %v1509, %v1541
    %1546 = vrot.lane.b32.xlu0 %v1528, 1
    %v1547 = vpop.permute.xlu0 %1546
    %1548 = vrot.lane.b32.xlu0 %v1529, 1
    %v1549 = vpop.permute.xlu0 %1548
    %v1550 = vsel %vm127, %v1547, %v1549
    %v1551 = vsel %vm127, %v1549, %v1547
    %v1552 = vmul.f32 %v1551, %v65
    %v1553 = vmul.f32 %v1550, %v66
    %v1554 = vadd.f32 %v1552, %v1536
    %v1555 = vadd.f32 %v1553, %v1537
    %1556 = vrot.lane.b32.xlu0 %v1544, 127
    %v1557 = vpop.permute.xlu0 %1556
    %1558 = vrot.lane.b32.xlu0 %v1545, 127
    %v1559 = vpop.permute.xlu0 %1558
    %v1560 = vsel %vm136, %v1557, %v1559
    %v1561 = vsel %vm136, %v1559, %v1557
    %v1562 = vmul.f32 %v1560, %v69
    %v1563 = vmul.f32 %v1561, %v70
    %v1564 = vadd.f32 %v1554, %v1562
    %v1565 = vadd.f32 %v1555, %v1563
    %s1566 = sld [smem:[#allocation9 + $0x20]]
    %v1567 = vstv %s1566
    %v1568 = vadd.f32 %v1564, %v1567
    %v1569 = vadd.f32 %v1565, %v1567
    %v1570 = vmax.f32 %v1568, 0.0
    %v1571 = vmax.f32 %v1569, 0.0
    %s1572 = sld [smem:[#allocation9 + $0x21]]
    %v1573 = vstv %s1572
    %v1574 = vmul.f32 %v1573, %v1570
    %v1575 = vmul.f32 %v1573, %v1571
    %s1576 = sld [smem:[#allocation9 + $0x22]]
    %v1577 = vstv %s1576
    %v1578 = vmul.f32 %v1577, %v1570
    %v1579 = vmul.f32 %v1577, %v1571
    %s1580 = sld [smem:[#allocation9 + $0x23]]
    %v1581 = vstv %s1580
    %v1582 = vmul.f32 %v1581, %v1570
    %v1583 = vmul.f32 %v1581, %v1571
    %1584 = vrot.lane.b32.xlu0 %v1574, 1
    %v1585 = vpop.permute.xlu0 %1584
    %1586 = vrot.lane.b32.xlu0 %v1575, 1
    %v1587 = vpop.permute.xlu0 %1586
    %v1588 = vsel %vm127, %v1585, %v1587
    %v1589 = vsel %vm127, %v1587, %v1585
    %v1590 = vmul.f32 %v1589, %v65
    %v1591 = vmul.f32 %v1588, %v66
    %v1592 = vadd.f32 %v1590, %v1578
    %v1593 = vadd.f32 %v1591, %v1579
    %1594 = vrot.lane.b32.xlu0 %v1582, 127
    %v1595 = vpop.permute.xlu0 %1594
    %1596 = vrot.lane.b32.xlu0 %v1583, 127
    %v1597 = vpop.permute.xlu0 %1596
    %v1598 = vsel %vm136, %v1595, %v1597
    %v1599 = vsel %vm136, %v1597, %v1595
    %v1600 = vmul.f32 %v1598, %v69
    %v1601 = vmul.f32 %v1599, %v70
    %v1602 = vadd.f32 %v1592, %v1600
    %v1603 = vadd.f32 %v1593, %v1601
    %v1606 = vrot.slane %v1603, 7
    %v1607 = vsel %vm147, %v1602, %v1606
    %vm1609 = vcmp.lt.s32.totalorder %v106, 256
    %vm1610 = vmand %vm107, %vm1609
    %1611 = vst.msk [vmem:[#allocation10] sm:$0x3] %vm1610, %v1607
    // Predicated region
    $region26: #{tpu_custom_call.1} parent=1 // pred_check
      _
    $region27: #{tpu_custom_call.1} parent=1 // pred_check_branch
      %1613 = sbr.rel (0) target = $region29
    $region28: #{tpu_custom_call.1} parent=1 // pred_region
      %1615 = vsyncadd [#allocation5], 0
      %s1617 = sshll.u32 [#allocation10], 4
      %s1618 = int_to_ptr.vmem [resolvable:$true] %s1617
      %s1619 = sshll.u32 %s3, 4
      %s1620 = int_to_ptr.hbm [resolvable:$true] %s1619
      %1622 = dma.vmem_to_hbm [thread:$0]  %s1618, 32, %s1620, [#allocation5]
    $region29: #{tpu_custom_call.1} parent=1 // pred_fallthru
      _
    // Predicated region
    $region30: #{tpu_custom_call.1} parent=1 // pred_check
      _
    $region31: #{tpu_custom_call.1} parent=1 // pred_check_branch
      %1624 = sbr.rel (0) target = $region33
    $region32: #{tpu_custom_call.1} parent=1 // pred_region
      %1626 = dma.done [#allocation5], 32
    $region33: #{tpu_custom_call.1} parent=1 // pred_fallthru
      _
    %1627 = vsyncpa [#allocation4], 1
    %1628 = vsyncpa [#allocation8], 1
    %1629 = vsyncpa [#allocation5], 1
    %1630 = vsyncpa [#allocation6], 1

</llo_original>
